<compile_context>
chip_gen: v5e
topology: v5e:2x2
jax: 0.10.0
libtpu: 0.0.40
codegen_flags: <defaults>
</compile_context>

<pallas_src>
import jax
import jax.numpy as jnp
from jax.experimental import pallas as pl
from jax.experimental.pallas import tpu as pltpu

# ---- static problem sizes (small, consistent with the module's forward) ----
B, C, H, W = 2, 4, 16, 16       # obs: [B, C, H, W]
KH = KW = 3                     # conv kernel
E = 8                           # obs embedding channels (conv out)
HID = 32                        # policy hidden width
NA = 6                          # number of discrete actions
HW = H * W
K = KH * KW * C                 # im2col contraction dim (36)
KP = K + 1                      # + ones column for the conv-bias fold

# padded / blocked sizes used inside the kernel (lane/sublane dense)
BB = 8                          # batch elements per grid step (== sublanes)
EP = 128                        # lane-padded embedding width (col E carries the 1)
HP = 128                        # lane-padded hidden width    (col HID carries the 1)
NAP = 128                       # lane-padded action width


def policy_kernel(patches_ref, pool_ref, wconv_ref, w1_ref, w2_ref, probs_ref):
    """One grid step == one block of BB observations."""
    # --- obs_emb_model: 3x3 conv as im2col matmul (bf16 x bf16 -> f32 MXU);
    #     bconv folded into wconv through the patches' ones column -------------
    conv = jnp.maximum(
        jnp.dot(patches_ref[...], wconv_ref[...],
                preferred_element_type=jnp.float32), 0.0)            # [BB*HW, EP] f32

    # --- global average pool as one bf16 MXU matmul with a block-diagonal
    #     host-built pool matrix (row b averages rows b*HW..(b+1)*HW) ---------
    emb = jnp.dot(pool_ref[...], conv.astype(jnp.bfloat16),
                  preferred_element_type=jnp.float32)                 # [BB, EP] f32
    # emb[b, :E] = pooled features, emb[b, E] = 1 (carries b1), padded rows are 0.

    # --- policy_comb_net: Linear -> ReLU -> Linear; b1/b2 folded via the
    #     ones-column chain, weights stay bf16, activations cast to bf16 ------
    h = jnp.maximum(
        jnp.dot(emb.astype(jnp.bfloat16), w1_ref[...],
                preferred_element_type=jnp.float32), 0.0)             # [BB, HP] f32
    logits = jnp.dot(h.astype(jnp.bfloat16), w2_ref[...],
                     preferred_element_type=jnp.float32)              # [BB, NAP] f32

    # --- numerically-stable softmax; padded action lanes already hold -1e30
    #     (folded into w2's bias row) so exp underflows to exactly 0 ----------
    m = jnp.max(logits, axis=-1, keepdims=True)
    e = jnp.exp(logits - m)
    probs_ref[...] = e / jnp.sum(e, axis=-1, keepdims=True)           # exact divide


def _im2col(obs_nchw):
    """NCHW -> im2col patches [B, HW, KP] with the bias ones-column appended.
    TODO(synk): for large H/W/B build the conv in-kernel from the raw NHWC
    image (9 shifted/masked matmuls via pltpu.roll) to avoid the KH*KW im2col
    expansion in HBM; negligible at these toy sizes."""
    b = obs_nchw.shape[0]
    x = jnp.transpose(obs_nchw, (0, 2, 3, 1))                         # NHWC
    xp = jnp.pad(x, ((0, 0), (1, 1), (1, 1), (0, 0)))                 # pad=1
    cols = [xp[:, kh:kh + H, kw:kw + W, :]
            for kh in range(KH) for kw in range(KW)]                  # [B,H,W,C] x9
    cols.append(jnp.ones((b, H, W, 1), obs_nchw.dtype))               # ones column
    patches = jnp.concatenate(cols, axis=-1)                          # [B,H,W,KP]
    return patches.reshape(b, HW, KP)


def _pool_matrix():
    """Block-diagonal average-pool matrix [BB, BB*HW]: row b holds 1/HW over
    columns b*HW..(b+1)*HW (1/256 is exact in bf16). Built once, host-side."""
    row = jax.lax.broadcasted_iota(jnp.int32, (BB, BB * HW), 0)
    col_blk = jax.lax.broadcasted_iota(jnp.int32, (BB, BB * HW), 1) // HW
    pool = jnp.where(row == col_blk, jnp.float32(1.0 / HW), jnp.float32(0.0))
    return pool.astype(jnp.bfloat16)


def _prepare_params(params):
    """Pad weights to lane-dense shapes, fold all biases and the softmax lane
    mask, cast to bf16 (one-time host-side prep)."""
    wconv, bconv, w1, b1, w2, b2 = params
    wconv_p = jnp.zeros((KP, EP), jnp.float32)
    wconv_p = wconv_p.at[:K, :E].set(wconv)
    wconv_p = wconv_p.at[K, :E].set(bconv.reshape(E))    # bconv via ones column
    wconv_p = wconv_p.at[K, E].set(1.0)                  # conv[:, E] == 1

    w1_p = jnp.zeros((EP, HP), jnp.float32)
    w1_p = w1_p.at[:E, :HID].set(w1)
    w1_p = w1_p.at[E, :HID].set(b1.reshape(HID))         # b1 via emb[:, E] == 1
    w1_p = w1_p.at[E, HID].set(1.0)                      # h[:, HID] == 1

    w2_p = jnp.zeros((HP, NAP), jnp.float32)
    w2_p = w2_p.at[:HID, :NA].set(w2)
    w2_p = w2_p.at[HID, :NA].set(b2.reshape(NA))         # b2 via h[:, HID] == 1
    w2_p = w2_p.at[HID, NA:].set(-1e30)                  # softmax mask, folded

    return (wconv_p.astype(jnp.bfloat16),
            w1_p.astype(jnp.bfloat16),
            w2_p.astype(jnp.bfloat16))


def policy_forward(obs_nchw, params):
    wconv_p, w1_p, w2_p = _prepare_params(params)
    patches = _im2col(obs_nchw.astype(jnp.bfloat16))                  # [B,HW,KP] bf16

    b_pad = pl.cdiv(B, BB) * BB
    if b_pad != B:
        patches = jnp.pad(patches, ((0, b_pad - B), (0, 0), (0, 0)))  # zero rows
    patches_flat = patches.reshape(b_pad * HW, KP)
    pool = _pool_matrix()
    num_blocks = b_pad // BB

    out = pl.pallas_call(
        policy_kernel,
        out_shape=jax.ShapeDtypeStruct((b_pad, NAP), jnp.float32),
        grid=(num_blocks,),
        in_specs=[
            pl.BlockSpec((BB * HW, KP), lambda i: (i, 0)),            # patch block
            pl.BlockSpec((BB, BB * HW), lambda i: (0, 0)),            # pool matrix
            pl.BlockSpec((KP, EP), lambda i: (0, 0)),                 # shared weights
            pl.BlockSpec((EP, HP), lambda i: (0, 0)),
            pl.BlockSpec((HP, NAP), lambda i: (0, 0)),
        ],
        out_specs=pl.BlockSpec((BB, NAP), lambda i: (i, 0)),
        compiler_params=pltpu.CompilerParams(
            dimension_semantics=("parallel",)),   # splits batch blocks on v7x's 2 TCs
    )(patches_flat, pool, wconv_p, w1_p, w2_p)
    return out[:B, :NA]                                               # [B, NA]


def policy_forward_ref(obs_nchw, params):
    """Pure-JAX reference mirroring the kernel's bf16-matmul / f32-accumulate
    numeric flow (for validation)."""
    wconv, bconv, w1, b1, w2, b2 = params
    bf = jnp.bfloat16
    patches = _im2col(obs_nchw.astype(bf))[..., :K]                   # drop ones col
    conv = jnp.maximum(
        jnp.einsum('bpk,ke->bpe', patches, wconv.astype(bf),
                   preferred_element_type=jnp.float32)
        + bconv.reshape(1, 1, E), 0.0)
    emb = jnp.mean(conv.astype(bf).astype(jnp.float32), axis=1)       # [B, E]
    h = jnp.maximum(
        jnp.dot(emb.astype(bf), w1.astype(bf),
                preferred_element_type=jnp.float32) + b1.reshape(1, HID), 0.0)
    logits = jnp.dot(h.astype(bf), w2.astype(bf),
                     preferred_element_type=jnp.float32) + b2.reshape(1, NA)
    return jax.nn.softmax(logits, axis=-1)


def init_params(key):
    """Deterministic synthetic parameters (shapes implied by the module)."""
    ks = jax.random.split(key, 6)
    wconv = jax.random.normal(ks[0], (K, E), jnp.float32) * (2.0 / K) ** 0.5
    bconv = jax.random.normal(ks[1], (1, E), jnp.float32) * 0.1
    w1 = jax.random.normal(ks[2], (E, HID), jnp.float32) * (2.0 / E) ** 0.5
    b1 = jax.random.normal(ks[3], (1, HID), jnp.float32) * 0.1
    w2 = jax.random.normal(ks[4], (HID, NA), jnp.float32) * (1.0 / HID) ** 0.5
    b2 = jax.random.normal(ks[5], (1, NA), jnp.float32) * 0.1
    return wconv, bconv, w1, b1, w2, b2


# TODO(synk): `get_action` (Categorical sampling) and `policy_loss` are
# host-side training/inference logic in the PyTorch module, not part of the
# forward hot path; only forward() is implemented as a kernel.

if __name__ == "__main__":
    key = jax.random.PRNGKey(0)
    k_obs, k_par = jax.random.split(key)
    obs = jax.random.normal(k_obs, (B, C, H, W), jnp.float32)         # NCHW
    params = init_params(k_par)

    probs = jax.block_until_ready(policy_forward(obs, params))
    probs_ref = jax.block_until_ready(policy_forward_ref(obs, params))

    assert probs.shape == (B, NA)
    # exact softmax divide -> rows sum to 1 to f32 precision
    assert jnp.allclose(jnp.sum(probs, axis=-1), 1.0, atol=1e-3)
    assert jnp.allclose(probs, probs_ref, rtol=2e-2, atol=2e-3)
    print("KERNEL_OK")
</pallas_src>

<mosaic_0001>
module attributes {stable_mosaic.version = 11 : i64} {
  func.func @policy_kernel(%arg0: i32, %arg1: memref<2048x37xbf16, #tpu.memory_space<vmem>>, %arg2: memref<8x2048xbf16, #tpu.memory_space<vmem>>, %arg3: memref<37x128xbf16, #tpu.memory_space<vmem>>, %arg4: memref<128x128xbf16, #tpu.memory_space<vmem>>, %arg5: memref<128x128xbf16, #tpu.memory_space<vmem>>, %arg6: memref<8x128xf32, #tpu.memory_space<vmem>>) attributes {dimension_semantics = [#tpu.dimension_semantics<parallel>], iteration_bounds = array<i64: 1>, scalar_prefetch = 0 : i64, scratch_operands = 0 : i64, tpu.core_type = #tpu.core_type<tc>, window_params = [{transform_indices = @transform_0, window_bounds = array<i64: 2048, 37>}, {pipeline_mode = #tpu.pipeline_mode<synchronous>, transform_indices = @transform_1, window_bounds = array<i64: 8, 2048>}, {pipeline_mode = #tpu.pipeline_mode<synchronous>, transform_indices = @transform_2, window_bounds = array<i64: 37, 128>}, {pipeline_mode = #tpu.pipeline_mode<synchronous>, transform_indices = @transform_3, window_bounds = array<i64: 128, 128>}, {pipeline_mode = #tpu.pipeline_mode<synchronous>, transform_indices = @transform_4, window_bounds = array<i64: 128, 128>}, {transform_indices = @transform_5, window_bounds = array<i64: 8, 128>}]} {
    %c0 = arith.constant 0 : index
    %c0_0 = arith.constant 0 : index
    %0 = vector.load %arg1[%c0, %c0_0] : memref<2048x37xbf16, #tpu.memory_space<vmem>>, vector<2048x37xbf16>
    %c0_1 = arith.constant 0 : index
    %c0_2 = arith.constant 0 : index
    %1 = vector.load %arg3[%c0_1, %c0_2] : memref<37x128xbf16, #tpu.memory_space<vmem>>, vector<37x128xbf16>
    %cst = arith.constant dense<0.000000e+00> : vector<2048x128xf32>
    %2 = tpu.matmul %0, %1, %cst {dimension_numbers = #tpu.dot_dimension_numbers<[1], [0], [0], [1], [0, 0, 1, 1], [], []>} : vector<2048x37xbf16>, vector<37x128xbf16>, vector<2048x128xf32> -> vector<2048x128xf32>
    %cst_3 = arith.constant 0.000000e+00 : f32
    %3 = vector.broadcast %cst_3 : f32 to vector<2048x128xf32>
    %4 = arith.maximumf %2, %3 : vector<2048x128xf32>
    %c0_4 = arith.constant 0 : index
    %c0_5 = arith.constant 0 : index
    %5 = vector.load %arg2[%c0_4, %c0_5] : memref<8x2048xbf16, #tpu.memory_space<vmem>>, vector<8x2048xbf16>
    %6 = arith.truncf %4 : vector<2048x128xf32> to vector<2048x128xbf16>
    %cst_6 = arith.constant dense<0.000000e+00> : vector<8x128xf32>
    %7 = tpu.matmul %5, %6, %cst_6 {dimension_numbers = #tpu.dot_dimension_numbers<[1], [0], [0], [1], [0, 0, 1, 1], [], []>} : vector<8x2048xbf16>, vector<2048x128xbf16>, vector<8x128xf32> -> vector<8x128xf32>
    %8 = arith.truncf %7 : vector<8x128xf32> to vector<8x128xbf16>
    %c0_7 = arith.constant 0 : index
    %c0_8 = arith.constant 0 : index
    %9 = vector.load %arg4[%c0_7, %c0_8] : memref<128x128xbf16, #tpu.memory_space<vmem>>, vector<128x128xbf16>
    %cst_9 = arith.constant dense<0.000000e+00> : vector<8x128xf32>
    %10 = tpu.matmul %8, %9, %cst_9 {dimension_numbers = #tpu.dot_dimension_numbers<[1], [0], [0], [1], [0, 0, 1, 1], [], []>} : vector<8x128xbf16>, vector<128x128xbf16>, vector<8x128xf32> -> vector<8x128xf32>
    %cst_10 = arith.constant 0.000000e+00 : f32
    %11 = vector.broadcast %cst_10 : f32 to vector<8x128xf32>
    %12 = arith.maximumf %10, %11 : vector<8x128xf32>
    %13 = arith.truncf %12 : vector<8x128xf32> to vector<8x128xbf16>
    %c0_11 = arith.constant 0 : index
    %c0_12 = arith.constant 0 : index
    %14 = vector.load %arg5[%c0_11, %c0_12] : memref<128x128xbf16, #tpu.memory_space<vmem>>, vector<128x128xbf16>
    %cst_13 = arith.constant dense<0.000000e+00> : vector<8x128xf32>
    %15 = tpu.matmul %13, %14, %cst_13 {dimension_numbers = #tpu.dot_dimension_numbers<[1], [0], [0], [1], [0, 0, 1, 1], [], []>} : vector<8x128xbf16>, vector<128x128xbf16>, vector<8x128xf32> -> vector<8x128xf32>
    %cst_14 = arith.constant dense<0xFF800000> : vector<8xf32>
    %16 = vector.multi_reduction <maximumf>, %15, %cst_14 [1] : vector<8x128xf32> to vector<8xf32>
    %17 = vector.shape_cast %16 : vector<8xf32> to vector<8x1xf32>
    %18 = vector.broadcast %17 : vector<8x1xf32> to vector<8x128xf32>
    %19 = arith.subf %15, %18 : vector<8x128xf32>
    %20 = math.exp %19 : vector<8x128xf32>
    %cst_15 = arith.constant dense<0.000000e+00> : vector<8xf32>
    %21 = vector.multi_reduction <add>, %20, %cst_15 [1] : vector<8x128xf32> to vector<8xf32>
    %22 = vector.shape_cast %21 : vector<8xf32> to vector<8x1xf32>
    %23 = vector.broadcast %22 : vector<8x1xf32> to vector<8x128xf32>
    %24 = arith.divf %20, %23 : vector<8x128xf32>
    %c0_16 = arith.constant 0 : index
    %c0_17 = arith.constant 0 : index
    %25 = vector.load %arg6[%c0_16, %c0_17] : memref<8x128xf32, #tpu.memory_space<vmem>>, vector<8x128xf32>
    tpu.vector_store %arg6[%c0_16, %c0_17], %24 {strides = array<i32>} : memref<8x128xf32, #tpu.memory_space<vmem>>, vector<8x128xf32>,
    return
  }
  func.func @transform_0(%arg0: i32) -> (i32, i32) {
    %c0_i32 = arith.constant 0 : i32
    %c0_i32_0 = arith.constant 0 : i32
    return %arg0, %c0_i32 : i32, i32
  }
  func.func @transform_1(%arg0: i32) -> (i32, i32) {
    %c0_i32 = arith.constant 0 : i32
    %c0_i32_0 = arith.constant 0 : i32
    %c0_i32_1 = arith.constant 0 : i32
    return %c0_i32, %c0_i32_0 : i32, i32
  }
  func.func @transform_2(%arg0: i32) -> (i32, i32) {
    %c0_i32 = arith.constant 0 : i32
    %c0_i32_0 = arith.constant 0 : i32
    %c0_i32_1 = arith.constant 0 : i32
    return %c0_i32, %c0_i32_0 : i32, i32
  }
  func.func @transform_3(%arg0: i32) -> (i32, i32) {
    %c0_i32 = arith.constant 0 : i32
    %c0_i32_0 = arith.constant 0 : i32
    %c0_i32_1 = arith.constant 0 : i32
    return %c0_i32, %c0_i32_0 : i32, i32
  }
  func.func @transform_4(%arg0: i32) -> (i32, i32) {
    %c0_i32 = arith.constant 0 : i32
    %c0_i32_0 = arith.constant 0 : i32
    %c0_i32_1 = arith.constant 0 : i32
    return %c0_i32, %c0_i32_0 : i32, i32
  }
  func.func @transform_5(%arg0: i32) -> (i32, i32) {
    %c0_i32 = arith.constant 0 : i32
    %c0_i32_0 = arith.constant 0 : i32
    return %arg0, %c0_i32 : i32, i32
  }
}

</mosaic_0001>

<llo_original>
// kernel: tpu_custom_call.1
$region0: #{tpu_custom_call.1}
  #allocation0 [shape = 'u32[]', space=smem, size = 0x4, offset = 0x4, fixed_abs, tag = 'smem constant byte address 0x4 - core index']
  #allocation1 [shape = 'u32[72,128]{1,0:T(1,128)}', space=vmem, size = 0x9000, scoped, tag = 'internal scratch']
  %s0 = inlined_call_operand.vmem [shape: bf16[2048,37], index: 0, kind: input, shape index: {}]
  %s1 = inlined_call_operand.vmem [shape: bf16[8,2048], index: 1, kind: input, shape index: {}]
  %s2 = inlined_call_operand.vmem [shape: bf16[37,128], index: 2, kind: input, shape index: {}]
  %s3 = inlined_call_operand.vmem [shape: bf16[128,128], index: 3, kind: input, shape index: {}]
  %s4 = inlined_call_operand.vmem [shape: bf16[128,128], index: 4, kind: input, shape index: {}]
  %s5 = inlined_call_operand.hbm [shape: f32[8,128], index: 5, kind: output, shape index: {}]
  %s6 = sld [smem:[#allocation0]]
  $region30: #{tpu_custom_call.1} parent=0
    _
  %s8 = ssub.s32 1, %s6
  %s9 = scalar_select 0, %s8, %s6
  $region1: #{tpu_custom_call.1} parent=0
    #allocation2 [shape = 'u8[4096]{0}', space=vmem, size = 0x1000, scoped, tag = 'output window, operand 0, single buffered']
    #allocation3 [shape = 's32[1]{0}', space=sflag, size = 0x4, scoped, tag = 'scoped memory for tpu_custom_call.1']
    %10 = vsyncpa [#allocation3], 0
    // Predicated region
    $region2: #{tpu_custom_call.1} parent=1 // pred_check
      _
    $region3: #{tpu_custom_call.1} parent=1 // pred_check_branch
      %12 = sbr.rel (0) target = $region5
    $region4: #{tpu_custom_call.1} parent=1 // pred_region
      _
    $region5: #{tpu_custom_call.1} parent=1 // pred_fallthru
      _
    // Predicated region
    $region6: #{tpu_custom_call.1} parent=1 // pred_check
      _
    $region7: #{tpu_custom_call.1} parent=1 // pred_check_branch
      %14 = sbr.rel (0) target = $region9
    $region8: #{tpu_custom_call.1} parent=1 // pred_region
      _
    $region9: #{tpu_custom_call.1} parent=1 // pred_fallthru
      _
    // Predicated region
    $region10: #{tpu_custom_call.1} parent=1 // pred_check
      _
    $region11: #{tpu_custom_call.1} parent=1 // pred_check_branch
      %16 = sbr.rel (0) target = $region13
    $region12: #{tpu_custom_call.1} parent=1 // pred_region
      _
    $region13: #{tpu_custom_call.1} parent=1 // pred_fallthru
      _
    // Predicated region
    $region14: #{tpu_custom_call.1} parent=1 // pred_check
      _
    $region15: #{tpu_custom_call.1} parent=1 // pred_check_branch
      %18 = sbr.rel (0) target = $region17
    $region16: #{tpu_custom_call.1} parent=1 // pred_region
      _
    $region17: #{tpu_custom_call.1} parent=1 // pred_fallthru
      _
    // Predicated region
    $region18: #{tpu_custom_call.1} parent=1 // pred_check
      _
    $region19: #{tpu_custom_call.1} parent=1 // pred_check_branch
      %20 = sbr.rel (0) target = $region21
    $region20: #{tpu_custom_call.1} parent=1 // pred_region
      _
    $region21: #{tpu_custom_call.1} parent=1 // pred_fallthru
      _
    %v22 = vld [vmem:[%s0] sm:$0xf]
    %v23 = vld [vmem:[%s0 + $0x4] sm:$0xf]
    %v24 = vld [vmem:[%s0 + $0x8] sm:$0xf]
    %v25 = vld [vmem:[%s0 + $0xc] sm:$0xf]
    %v26 = vld [vmem:[%s0 + $0x10] sm:$0xf]
    %v27 = vld [vmem:[%s0 + $0x14] sm:$0xf]
    %v28 = vld [vmem:[%s0 + $0x18] sm:$0xf]
    %v29 = vld [vmem:[%s0 + $0x1c] sm:$0xf]
    %v30 = vld [vmem:[%s0 + $0x20] sm:$0xf]
    %v31 = vld [vmem:[%s0 + $0x24] sm:$0xf]
    %v32 = vld [vmem:[%s0 + $0x28] sm:$0xf]
    %v33 = vld [vmem:[%s0 + $0x2c] sm:$0xf]
    %v34 = vld [vmem:[%s0 + $0x30] sm:$0xf]
    %v35 = vld [vmem:[%s0 + $0x34] sm:$0xf]
    %v36 = vld [vmem:[%s0 + $0x38] sm:$0xf]
    %v37 = vld [vmem:[%s0 + $0x3c] sm:$0xf]
    %v38 = vld [vmem:[%s0 + $0x40] sm:$0xf]
    %v39 = vld [vmem:[%s0 + $0x44] sm:$0xf]
    %v40 = vld [vmem:[%s0 + $0x48] sm:$0xf]
    %v41 = vld [vmem:[%s0 + $0x4c] sm:$0xf]
    %v42 = vld [vmem:[%s0 + $0x50] sm:$0xf]
    %v43 = vld [vmem:[%s0 + $0x54] sm:$0xf]
    %v44 = vld [vmem:[%s0 + $0x58] sm:$0xf]
    %v45 = vld [vmem:[%s0 + $0x5c] sm:$0xf]
    %v46 = vld [vmem:[%s0 + $0x60] sm:$0xf]
    %v47 = vld [vmem:[%s0 + $0x64] sm:$0xf]
    %v48 = vld [vmem:[%s0 + $0x68] sm:$0xf]
    %v49 = vld [vmem:[%s0 + $0x6c] sm:$0xf]
    %v50 = vld [vmem:[%s0 + $0x70] sm:$0xf]
    %v51 = vld [vmem:[%s0 + $0x74] sm:$0xf]
    %v52 = vld [vmem:[%s0 + $0x78] sm:$0xf]
    %v53 = vld [vmem:[%s0 + $0x7c] sm:$0xf]
    %v54 = vld [vmem:[%s0 + $0x80] sm:$0xf]
    %v55 = vld [vmem:[%s0 + $0x84] sm:$0xf]
    %v56 = vld [vmem:[%s0 + $0x88] sm:$0xf]
    %v57 = vld [vmem:[%s0 + $0x8c] sm:$0xf]
    %v58 = vld [vmem:[%s0 + $0x90] sm:$0xf]
    %v59 = vld [vmem:[%s0 + $0x94] sm:$0xf]
    %v60 = vld [vmem:[%s0 + $0x98] sm:$0xf]
    %v61 = vld [vmem:[%s0 + $0x9c] sm:$0xf]
    %v62 = vld [vmem:[%s0 + $0xa0] sm:$0xf]
    %v63 = vld [vmem:[%s0 + $0xa4] sm:$0xf]
    %v64 = vld [vmem:[%s0 + $0xa8] sm:$0xf]
    %v65 = vld [vmem:[%s0 + $0xac] sm:$0xf]
    %v66 = vld [vmem:[%s0 + $0xb0] sm:$0xf]
    %v67 = vld [vmem:[%s0 + $0xb4] sm:$0xf]
    %v68 = vld [vmem:[%s0 + $0xb8] sm:$0xf]
    %v69 = vld [vmem:[%s0 + $0xbc] sm:$0xf]
    %v70 = vld [vmem:[%s0 + $0xc0] sm:$0xf]
    %v71 = vld [vmem:[%s0 + $0xc4] sm:$0xf]
    %v72 = vld [vmem:[%s0 + $0xc8] sm:$0xf]
    %v73 = vld [vmem:[%s0 + $0xcc] sm:$0xf]
    %v74 = vld [vmem:[%s0 + $0xd0] sm:$0xf]
    %v75 = vld [vmem:[%s0 + $0xd4] sm:$0xf]
    %v76 = vld [vmem:[%s0 + $0xd8] sm:$0xf]
    %v77 = vld [vmem:[%s0 + $0xdc] sm:$0xf]
    %v78 = vld [vmem:[%s0 + $0xe0] sm:$0xf]
    %v79 = vld [vmem:[%s0 + $0xe4] sm:$0xf]
    %v80 = vld [vmem:[%s0 + $0xe8] sm:$0xf]
    %v81 = vld [vmem:[%s0 + $0xec] sm:$0xf]
    %v82 = vld [vmem:[%s0 + $0xf0] sm:$0xf]
    %v83 = vld [vmem:[%s0 + $0xf4] sm:$0xf]
    %v84 = vld [vmem:[%s0 + $0xf8] sm:$0xf]
    %v85 = vld [vmem:[%s0 + $0xfc] sm:$0xf]
    %v86 = vld [vmem:[%s0 + $0x100] sm:$0xf]
    %v87 = vld [vmem:[%s0 + $0x104] sm:$0xf]
    %v88 = vld [vmem:[%s0 + $0x108] sm:$0xf]
    %v89 = vld [vmem:[%s0 + $0x10c] sm:$0xf]
    %v90 = vld [vmem:[%s0 + $0x110] sm:$0xf]
    %v91 = vld [vmem:[%s0 + $0x114] sm:$0xf]
    %v92 = vld [vmem:[%s0 + $0x118] sm:$0xf]
    %v93 = vld [vmem:[%s0 + $0x11c] sm:$0xf]
    %v94 = vld [vmem:[%s0 + $0x120] sm:$0xf]
    %v95 = vld [vmem:[%s0 + $0x124] sm:$0xf]
    %v96 = vld [vmem:[%s0 + $0x128] sm:$0xf]
    %v97 = vld [vmem:[%s0 + $0x12c] sm:$0xf]
    %v98 = vld [vmem:[%s0 + $0x130] sm:$0xf]
    %v99 = vld [vmem:[%s0 + $0x134] sm:$0xf]
    %v100 = vld [vmem:[%s0 + $0x138] sm:$0xf]
    %v101 = vld [vmem:[%s0 + $0x13c] sm:$0xf]
    %v102 = vld [vmem:[%s0 + $0x140] sm:$0xf]
    %v103 = vld [vmem:[%s0 + $0x144] sm:$0xf]
    %v104 = vld [vmem:[%s0 + $0x148] sm:$0xf]
    %v105 = vld [vmem:[%s0 + $0x14c] sm:$0xf]
    %v106 = vld [vmem:[%s0 + $0x150] sm:$0xf]
    %v107 = vld [vmem:[%s0 + $0x154] sm:$0xf]
    %v108 = vld [vmem:[%s0 + $0x158] sm:$0xf]
    %v109 = vld [vmem:[%s0 + $0x15c] sm:$0xf]
    %v110 = vld [vmem:[%s0 + $0x160] sm:$0xf]
    %v111 = vld [vmem:[%s0 + $0x164] sm:$0xf]
    %v112 = vld [vmem:[%s0 + $0x168] sm:$0xf]
    %v113 = vld [vmem:[%s0 + $0x16c] sm:$0xf]
    %v114 = vld [vmem:[%s0 + $0x170] sm:$0xf]
    %v115 = vld [vmem:[%s0 + $0x174] sm:$0xf]
    %v116 = vld [vmem:[%s0 + $0x178] sm:$0xf]
    %v117 = vld [vmem:[%s0 + $0x17c] sm:$0xf]
    %v118 = vld [vmem:[%s0 + $0x180] sm:$0xf]
    %v119 = vld [vmem:[%s0 + $0x184] sm:$0xf]
    %v120 = vld [vmem:[%s0 + $0x188] sm:$0xf]
    %v121 = vld [vmem:[%s0 + $0x18c] sm:$0xf]
    %v122 = vld [vmem:[%s0 + $0x190] sm:$0xf]
    %v123 = vld [vmem:[%s0 + $0x194] sm:$0xf]
    %v124 = vld [vmem:[%s0 + $0x198] sm:$0xf]
    %v125 = vld [vmem:[%s0 + $0x19c] sm:$0xf]
    %v126 = vld [vmem:[%s0 + $0x1a0] sm:$0xf]
    %v127 = vld [vmem:[%s0 + $0x1a4] sm:$0xf]
    %v128 = vld [vmem:[%s0 + $0x1a8] sm:$0xf]
    %v129 = vld [vmem:[%s0 + $0x1ac] sm:$0xf]
    %v130 = vld [vmem:[%s0 + $0x1b0] sm:$0xf]
    %v131 = vld [vmem:[%s0 + $0x1b4] sm:$0xf]
    %v132 = vld [vmem:[%s0 + $0x1b8] sm:$0xf]
    %v133 = vld [vmem:[%s0 + $0x1bc] sm:$0xf]
    %v134 = vld [vmem:[%s0 + $0x1c0] sm:$0xf]
    %v135 = vld [vmem:[%s0 + $0x1c4] sm:$0xf]
    %v136 = vld [vmem:[%s0 + $0x1c8] sm:$0xf]
    %v137 = vld [vmem:[%s0 + $0x1cc] sm:$0xf]
    %v138 = vld [vmem:[%s0 + $0x1d0] sm:$0xf]
    %v139 = vld [vmem:[%s0 + $0x1d4] sm:$0xf]
    %v140 = vld [vmem:[%s0 + $0x1d8] sm:$0xf]
    %v141 = vld [vmem:[%s0 + $0x1dc] sm:$0xf]
    %v142 = vld [vmem:[%s0 + $0x1e0] sm:$0xf]
    %v143 = vld [vmem:[%s0 + $0x1e4] sm:$0xf]
    %v144 = vld [vmem:[%s0 + $0x1e8] sm:$0xf]
    %v145 = vld [vmem:[%s0 + $0x1ec] sm:$0xf]
    %v146 = vld [vmem:[%s0 + $0x1f0] sm:$0xf]
    %v147 = vld [vmem:[%s0 + $0x1f4] sm:$0xf]
    %v148 = vld [vmem:[%s0 + $0x1f8] sm:$0xf]
    %v149 = vld [vmem:[%s0 + $0x1fc] sm:$0xf]
    %v150 = vld [vmem:[%s0 + $0x200] sm:$0xf]
    %v151 = vld [vmem:[%s0 + $0x204] sm:$0xf]
    %v152 = vld [vmem:[%s0 + $0x208] sm:$0xf]
    %v153 = vld [vmem:[%s0 + $0x20c] sm:$0xf]
    %v154 = vld [vmem:[%s0 + $0x210] sm:$0xf]
    %v155 = vld [vmem:[%s0 + $0x214] sm:$0xf]
    %v156 = vld [vmem:[%s0 + $0x218] sm:$0xf]
    %v157 = vld [vmem:[%s0 + $0x21c] sm:$0xf]
    %v158 = vld [vmem:[%s0 + $0x220] sm:$0xf]
    %v159 = vld [vmem:[%s0 + $0x224] sm:$0xf]
    %v160 = vld [vmem:[%s0 + $0x228] sm:$0xf]
    %v161 = vld [vmem:[%s0 + $0x22c] sm:$0xf]
    %v162 = vld [vmem:[%s0 + $0x230] sm:$0xf]
    %v163 = vld [vmem:[%s0 + $0x234] sm:$0xf]
    %v164 = vld [vmem:[%s0 + $0x238] sm:$0xf]
    %v165 = vld [vmem:[%s0 + $0x23c] sm:$0xf]
    %v166 = vld [vmem:[%s0 + $0x240] sm:$0xf]
    %v167 = vld [vmem:[%s0 + $0x244] sm:$0xf]
    %v168 = vld [vmem:[%s0 + $0x248] sm:$0xf]
    %v169 = vld [vmem:[%s0 + $0x24c] sm:$0xf]
    %v170 = vld [vmem:[%s0 + $0x250] sm:$0xf]
    %v171 = vld [vmem:[%s0 + $0x254] sm:$0xf]
    %v172 = vld [vmem:[%s0 + $0x258] sm:$0xf]
    %v173 = vld [vmem:[%s0 + $0x25c] sm:$0xf]
    %v174 = vld [vmem:[%s0 + $0x260] sm:$0xf]
    %v175 = vld [vmem:[%s0 + $0x264] sm:$0xf]
    %v176 = vld [vmem:[%s0 + $0x268] sm:$0xf]
    %v177 = vld [vmem:[%s0 + $0x26c] sm:$0xf]
    %v178 = vld [vmem:[%s0 + $0x270] sm:$0xf]
    %v179 = vld [vmem:[%s0 + $0x274] sm:$0xf]
    %v180 = vld [vmem:[%s0 + $0x278] sm:$0xf]
    %v181 = vld [vmem:[%s0 + $0x27c] sm:$0xf]
    %v182 = vld [vmem:[%s0 + $0x280] sm:$0xf]
    %v183 = vld [vmem:[%s0 + $0x284] sm:$0xf]
    %v184 = vld [vmem:[%s0 + $0x288] sm:$0xf]
    %v185 = vld [vmem:[%s0 + $0x28c] sm:$0xf]
    %v186 = vld [vmem:[%s0 + $0x290] sm:$0xf]
    %v187 = vld [vmem:[%s0 + $0x294] sm:$0xf]
    %v188 = vld [vmem:[%s0 + $0x298] sm:$0xf]
    %v189 = vld [vmem:[%s0 + $0x29c] sm:$0xf]
    %v190 = vld [vmem:[%s0 + $0x2a0] sm:$0xf]
    %v191 = vld [vmem:[%s0 + $0x2a4] sm:$0xf]
    %v192 = vld [vmem:[%s0 + $0x2a8] sm:$0xf]
    %v193 = vld [vmem:[%s0 + $0x2ac] sm:$0xf]
    %v194 = vld [vmem:[%s0 + $0x2b0] sm:$0xf]
    %v195 = vld [vmem:[%s0 + $0x2b4] sm:$0xf]
    %v196 = vld [vmem:[%s0 + $0x2b8] sm:$0xf]
    %v197 = vld [vmem:[%s0 + $0x2bc] sm:$0xf]
    %v198 = vld [vmem:[%s0 + $0x2c0] sm:$0xf]
    %v199 = vld [vmem:[%s0 + $0x2c4] sm:$0xf]
    %v200 = vld [vmem:[%s0 + $0x2c8] sm:$0xf]
    %v201 = vld [vmem:[%s0 + $0x2cc] sm:$0xf]
    %v202 = vld [vmem:[%s0 + $0x2d0] sm:$0xf]
    %v203 = vld [vmem:[%s0 + $0x2d4] sm:$0xf]
    %v204 = vld [vmem:[%s0 + $0x2d8] sm:$0xf]
    %v205 = vld [vmem:[%s0 + $0x2dc] sm:$0xf]
    %v206 = vld [vmem:[%s0 + $0x2e0] sm:$0xf]
    %v207 = vld [vmem:[%s0 + $0x2e4] sm:$0xf]
    %v208 = vld [vmem:[%s0 + $0x2e8] sm:$0xf]
    %v209 = vld [vmem:[%s0 + $0x2ec] sm:$0xf]
    %v210 = vld [vmem:[%s0 + $0x2f0] sm:$0xf]
    %v211 = vld [vmem:[%s0 + $0x2f4] sm:$0xf]
    %v212 = vld [vmem:[%s0 + $0x2f8] sm:$0xf]
    %v213 = vld [vmem:[%s0 + $0x2fc] sm:$0xf]
    %v214 = vld [vmem:[%s0 + $0x300] sm:$0xf]
    %v215 = vld [vmem:[%s0 + $0x304] sm:$0xf]
    %v216 = vld [vmem:[%s0 + $0x308] sm:$0xf]
    %v217 = vld [vmem:[%s0 + $0x30c] sm:$0xf]
    %v218 = vld [vmem:[%s0 + $0x310] sm:$0xf]
    %v219 = vld [vmem:[%s0 + $0x314] sm:$0xf]
    %v220 = vld [vmem:[%s0 + $0x318] sm:$0xf]
    %v221 = vld [vmem:[%s0 + $0x31c] sm:$0xf]
    %v222 = vld [vmem:[%s0 + $0x320] sm:$0xf]
    %v223 = vld [vmem:[%s0 + $0x324] sm:$0xf]
    %v224 = vld [vmem:[%s0 + $0x328] sm:$0xf]
    %v225 = vld [vmem:[%s0 + $0x32c] sm:$0xf]
    %v226 = vld [vmem:[%s0 + $0x330] sm:$0xf]
    %v227 = vld [vmem:[%s0 + $0x334] sm:$0xf]
    %v228 = vld [vmem:[%s0 + $0x338] sm:$0xf]
    %v229 = vld [vmem:[%s0 + $0x33c] sm:$0xf]
    %v230 = vld [vmem:[%s0 + $0x340] sm:$0xf]
    %v231 = vld [vmem:[%s0 + $0x344] sm:$0xf]
    %v232 = vld [vmem:[%s0 + $0x348] sm:$0xf]
    %v233 = vld [vmem:[%s0 + $0x34c] sm:$0xf]
    %v234 = vld [vmem:[%s0 + $0x350] sm:$0xf]
    %v235 = vld [vmem:[%s0 + $0x354] sm:$0xf]
    %v236 = vld [vmem:[%s0 + $0x358] sm:$0xf]
    %v237 = vld [vmem:[%s0 + $0x35c] sm:$0xf]
    %v238 = vld [vmem:[%s0 + $0x360] sm:$0xf]
    %v239 = vld [vmem:[%s0 + $0x364] sm:$0xf]
    %v240 = vld [vmem:[%s0 + $0x368] sm:$0xf]
    %v241 = vld [vmem:[%s0 + $0x36c] sm:$0xf]
    %v242 = vld [vmem:[%s0 + $0x370] sm:$0xf]
    %v243 = vld [vmem:[%s0 + $0x374] sm:$0xf]
    %v244 = vld [vmem:[%s0 + $0x378] sm:$0xf]
    %v245 = vld [vmem:[%s0 + $0x37c] sm:$0xf]
    %v246 = vld [vmem:[%s0 + $0x380] sm:$0xf]
    %v247 = vld [vmem:[%s0 + $0x384] sm:$0xf]
    %v248 = vld [vmem:[%s0 + $0x388] sm:$0xf]
    %v249 = vld [vmem:[%s0 + $0x38c] sm:$0xf]
    %v250 = vld [vmem:[%s0 + $0x390] sm:$0xf]
    %v251 = vld [vmem:[%s0 + $0x394] sm:$0xf]
    %v252 = vld [vmem:[%s0 + $0x398] sm:$0xf]
    %v253 = vld [vmem:[%s0 + $0x39c] sm:$0xf]
    %v254 = vld [vmem:[%s0 + $0x3a0] sm:$0xf]
    %v255 = vld [vmem:[%s0 + $0x3a4] sm:$0xf]
    %v256 = vld [vmem:[%s0 + $0x3a8] sm:$0xf]
    %v257 = vld [vmem:[%s0 + $0x3ac] sm:$0xf]
    %v258 = vld [vmem:[%s0 + $0x3b0] sm:$0xf]
    %v259 = vld [vmem:[%s0 + $0x3b4] sm:$0xf]
    %v260 = vld [vmem:[%s0 + $0x3b8] sm:$0xf]
    %v261 = vld [vmem:[%s0 + $0x3bc] sm:$0xf]
    %v262 = vld [vmem:[%s0 + $0x3c0] sm:$0xf]
    %v263 = vld [vmem:[%s0 + $0x3c4] sm:$0xf]
    %v264 = vld [vmem:[%s0 + $0x3c8] sm:$0xf]
    %v265 = vld [vmem:[%s0 + $0x3cc] sm:$0xf]
    %v266 = vld [vmem:[%s0 + $0x3d0] sm:$0xf]
    %v267 = vld [vmem:[%s0 + $0x3d4] sm:$0xf]
    %v268 = vld [vmem:[%s0 + $0x3d8] sm:$0xf]
    %v269 = vld [vmem:[%s0 + $0x3dc] sm:$0xf]
    %v270 = vld [vmem:[%s0 + $0x3e0] sm:$0xf]
    %v271 = vld [vmem:[%s0 + $0x3e4] sm:$0xf]
    %v272 = vld [vmem:[%s0 + $0x3e8] sm:$0xf]
    %v273 = vld [vmem:[%s0 + $0x3ec] sm:$0xf]
    %v274 = vld [vmem:[%s0 + $0x3f0] sm:$0xf]
    %v275 = vld [vmem:[%s0 + $0x3f4] sm:$0xf]
    %v276 = vld [vmem:[%s0 + $0x3f8] sm:$0xf]
    %v277 = vld [vmem:[%s0 + $0x3fc] sm:$0xf]
    %v278 = vld [vmem:[%s2] sm:$0xf]
    %v279 = vld [vmem:[%s2 + $0x4] sm:$0xf]
    %v280 = vld [vmem:[%s2 + $0x8] sm:$0xf]
    %v281 = vld [vmem:[%s2 + $0xc] sm:$0xf]
    %v282 = vld [vmem:[%s2 + $0x10] sm:$0x7]
    %v539 = vunpack.c.l.b16 %v22
    %v540 = vunpack.c.l.b16 %v23
    %v541 = vunpack.c.l.b16 %v24
    %v542 = vunpack.c.l.b16 %v25
    %v543 = vunpack.c.l.b16 %v26
    %v544 = vunpack.c.l.b16 %v27
    %v545 = vunpack.c.l.b16 %v28
    %v546 = vunpack.c.l.b16 %v29
    %v547 = vunpack.c.l.b16 %v30
    %v548 = vunpack.c.l.b16 %v31
    %v549 = vunpack.c.l.b16 %v32
    %v550 = vunpack.c.l.b16 %v33
    %v551 = vunpack.c.l.b16 %v34
    %v552 = vunpack.c.l.b16 %v35
    %v553 = vunpack.c.l.b16 %v36
    %v554 = vunpack.c.l.b16 %v37
    %v555 = vunpack.c.l.b16 %v38
    %v556 = vunpack.c.l.b16 %v39
    %v557 = vunpack.c.l.b16 %v40
    %v558 = vunpack.c.l.b16 %v41
    %v559 = vunpack.c.l.b16 %v42
    %v560 = vunpack.c.l.b16 %v43
    %v561 = vunpack.c.l.b16 %v44
    %v562 = vunpack.c.l.b16 %v45
    %v563 = vunpack.c.l.b16 %v46
    %v564 = vunpack.c.l.b16 %v47
    %v565 = vunpack.c.l.b16 %v48
    %v566 = vunpack.c.l.b16 %v49
    %v567 = vunpack.c.l.b16 %v50
    %v568 = vunpack.c.l.b16 %v51
    %v569 = vunpack.c.l.b16 %v52
    %v570 = vunpack.c.l.b16 %v53
    %v571 = vunpack.c.l.b16 %v54
    %v572 = vunpack.c.l.b16 %v55
    %v573 = vunpack.c.l.b16 %v56
    %v574 = vunpack.c.l.b16 %v57
    %v575 = vunpack.c.l.b16 %v58
    %v576 = vunpack.c.l.b16 %v59
    %v577 = vunpack.c.l.b16 %v60
    %v578 = vunpack.c.l.b16 %v61
    %v579 = vunpack.c.l.b16 %v62
    %v580 = vunpack.c.l.b16 %v63
    %v581 = vunpack.c.l.b16 %v64
    %v582 = vunpack.c.l.b16 %v65
    %v583 = vunpack.c.l.b16 %v66
    %v584 = vunpack.c.l.b16 %v67
    %v585 = vunpack.c.l.b16 %v68
    %v586 = vunpack.c.l.b16 %v69
    %v587 = vunpack.c.l.b16 %v70
    %v588 = vunpack.c.l.b16 %v71
    %v589 = vunpack.c.l.b16 %v72
    %v590 = vunpack.c.l.b16 %v73
    %v591 = vunpack.c.l.b16 %v74
    %v592 = vunpack.c.l.b16 %v75
    %v593 = vunpack.c.l.b16 %v76
    %v594 = vunpack.c.l.b16 %v77
    %v595 = vunpack.c.l.b16 %v78
    %v596 = vunpack.c.l.b16 %v79
    %v597 = vunpack.c.l.b16 %v80
    %v598 = vunpack.c.l.b16 %v81
    %v599 = vunpack.c.l.b16 %v82
    %v600 = vunpack.c.l.b16 %v83
    %v601 = vunpack.c.l.b16 %v84
    %v602 = vunpack.c.l.b16 %v85
    %v603 = vunpack.c.l.b16 %v86
    %v604 = vunpack.c.l.b16 %v87
    %v605 = vunpack.c.l.b16 %v88
    %v606 = vunpack.c.l.b16 %v89
    %v607 = vunpack.c.l.b16 %v90
    %v608 = vunpack.c.l.b16 %v91
    %v609 = vunpack.c.l.b16 %v92
    %v610 = vunpack.c.l.b16 %v93
    %v611 = vunpack.c.l.b16 %v94
    %v612 = vunpack.c.l.b16 %v95
    %v613 = vunpack.c.l.b16 %v96
    %v614 = vunpack.c.l.b16 %v97
    %v615 = vunpack.c.l.b16 %v98
    %v616 = vunpack.c.l.b16 %v99
    %v617 = vunpack.c.l.b16 %v100
    %v618 = vunpack.c.l.b16 %v101
    %v619 = vunpack.c.l.b16 %v102
    %v620 = vunpack.c.l.b16 %v103
    %v621 = vunpack.c.l.b16 %v104
    %v622 = vunpack.c.l.b16 %v105
    %v623 = vunpack.c.l.b16 %v106
    %v624 = vunpack.c.l.b16 %v107
    %v625 = vunpack.c.l.b16 %v108
    %v626 = vunpack.c.l.b16 %v109
    %v627 = vunpack.c.l.b16 %v110
    %v628 = vunpack.c.l.b16 %v111
    %v629 = vunpack.c.l.b16 %v112
    %v630 = vunpack.c.l.b16 %v113
    %v631 = vunpack.c.l.b16 %v114
    %v632 = vunpack.c.l.b16 %v115
    %v633 = vunpack.c.l.b16 %v116
    %v634 = vunpack.c.l.b16 %v117
    %v635 = vunpack.c.l.b16 %v118
    %v636 = vunpack.c.l.b16 %v119
    %v637 = vunpack.c.l.b16 %v120
    %v638 = vunpack.c.l.b16 %v121
    %v639 = vunpack.c.l.b16 %v122
    %v640 = vunpack.c.l.b16 %v123
    %v641 = vunpack.c.l.b16 %v124
    %v642 = vunpack.c.l.b16 %v125
    %v643 = vunpack.c.l.b16 %v126
    %v644 = vunpack.c.l.b16 %v127
    %v645 = vunpack.c.l.b16 %v128
    %v646 = vunpack.c.l.b16 %v129
    %v647 = vunpack.c.l.b16 %v130
    %v648 = vunpack.c.l.b16 %v131
    %v649 = vunpack.c.l.b16 %v132
    %v650 = vunpack.c.l.b16 %v133
    %v651 = vunpack.c.l.b16 %v134
    %v652 = vunpack.c.l.b16 %v135
    %v653 = vunpack.c.l.b16 %v136
    %v654 = vunpack.c.l.b16 %v137
    %v655 = vunpack.c.l.b16 %v138
    %v656 = vunpack.c.l.b16 %v139
    %v657 = vunpack.c.l.b16 %v140
    %v658 = vunpack.c.l.b16 %v141
    %v659 = vunpack.c.l.b16 %v142
    %v660 = vunpack.c.l.b16 %v143
    %v661 = vunpack.c.l.b16 %v144
    %v662 = vunpack.c.l.b16 %v145
    %v663 = vunpack.c.l.b16 %v146
    %v664 = vunpack.c.l.b16 %v147
    %v665 = vunpack.c.l.b16 %v148
    %v666 = vunpack.c.l.b16 %v149
    %v667 = vunpack.c.l.b16 %v150
    %v668 = vunpack.c.l.b16 %v151
    %v669 = vunpack.c.l.b16 %v152
    %v670 = vunpack.c.l.b16 %v153
    %v671 = vunpack.c.l.b16 %v154
    %v672 = vunpack.c.l.b16 %v155
    %v673 = vunpack.c.l.b16 %v156
    %v674 = vunpack.c.l.b16 %v157
    %v675 = vunpack.c.l.b16 %v158
    %v676 = vunpack.c.l.b16 %v159
    %v677 = vunpack.c.l.b16 %v160
    %v678 = vunpack.c.l.b16 %v161
    %v679 = vunpack.c.l.b16 %v162
    %v680 = vunpack.c.l.b16 %v163
    %v681 = vunpack.c.l.b16 %v164
    %v682 = vunpack.c.l.b16 %v165
    %v683 = vunpack.c.l.b16 %v166
    %v684 = vunpack.c.l.b16 %v167
    %v685 = vunpack.c.l.b16 %v168
    %v686 = vunpack.c.l.b16 %v169
    %v687 = vunpack.c.l.b16 %v170
    %v688 = vunpack.c.l.b16 %v171
    %v689 = vunpack.c.l.b16 %v172
    %v690 = vunpack.c.l.b16 %v173
    %v691 = vunpack.c.l.b16 %v174
    %v692 = vunpack.c.l.b16 %v175
    %v693 = vunpack.c.l.b16 %v176
    %v694 = vunpack.c.l.b16 %v177
    %v695 = vunpack.c.l.b16 %v178
    %v696 = vunpack.c.l.b16 %v179
    %v697 = vunpack.c.l.b16 %v180
    %v698 = vunpack.c.l.b16 %v181
    %v699 = vunpack.c.l.b16 %v182
    %v700 = vunpack.c.l.b16 %v183
    %v701 = vunpack.c.l.b16 %v184
    %v702 = vunpack.c.l.b16 %v185
    %v703 = vunpack.c.l.b16 %v186
    %v704 = vunpack.c.l.b16 %v187
    %v705 = vunpack.c.l.b16 %v188
    %v706 = vunpack.c.l.b16 %v189
    %v707 = vunpack.c.l.b16 %v190
    %v708 = vunpack.c.l.b16 %v191
    %v709 = vunpack.c.l.b16 %v192
    %v710 = vunpack.c.l.b16 %v193
    %v711 = vunpack.c.l.b16 %v194
    %v712 = vunpack.c.l.b16 %v195
    %v713 = vunpack.c.l.b16 %v196
    %v714 = vunpack.c.l.b16 %v197
    %v715 = vunpack.c.l.b16 %v198
    %v716 = vunpack.c.l.b16 %v199
    %v717 = vunpack.c.l.b16 %v200
    %v718 = vunpack.c.l.b16 %v201
    %v719 = vunpack.c.l.b16 %v202
    %v720 = vunpack.c.l.b16 %v203
    %v721 = vunpack.c.l.b16 %v204
    %v722 = vunpack.c.l.b16 %v205
    %v723 = vunpack.c.l.b16 %v206
    %v724 = vunpack.c.l.b16 %v207
    %v725 = vunpack.c.l.b16 %v208
    %v726 = vunpack.c.l.b16 %v209
    %v727 = vunpack.c.l.b16 %v210
    %v728 = vunpack.c.l.b16 %v211
    %v729 = vunpack.c.l.b16 %v212
    %v730 = vunpack.c.l.b16 %v213
    %v731 = vunpack.c.l.b16 %v214
    %v732 = vunpack.c.l.b16 %v215
    %v733 = vunpack.c.l.b16 %v216
    %v734 = vunpack.c.l.b16 %v217
    %v735 = vunpack.c.l.b16 %v218
    %v736 = vunpack.c.l.b16 %v219
    %v737 = vunpack.c.l.b16 %v220
    %v738 = vunpack.c.l.b16 %v221
    %v739 = vunpack.c.l.b16 %v222
    %v740 = vunpack.c.l.b16 %v223
    %v741 = vunpack.c.l.b16 %v224
    %v742 = vunpack.c.l.b16 %v225
    %v743 = vunpack.c.l.b16 %v226
    %v744 = vunpack.c.l.b16 %v227
    %v745 = vunpack.c.l.b16 %v228
    %v746 = vunpack.c.l.b16 %v229
    %v747 = vunpack.c.l.b16 %v230
    %v748 = vunpack.c.l.b16 %v231
    %v749 = vunpack.c.l.b16 %v232
    %v750 = vunpack.c.l.b16 %v233
    %v751 = vunpack.c.l.b16 %v234
    %v752 = vunpack.c.l.b16 %v235
    %v753 = vunpack.c.l.b16 %v236
    %v754 = vunpack.c.l.b16 %v237
    %v755 = vunpack.c.l.b16 %v238
    %v756 = vunpack.c.l.b16 %v239
    %v757 = vunpack.c.l.b16 %v240
    %v758 = vunpack.c.l.b16 %v241
    %v759 = vunpack.c.l.b16 %v242
    %v760 = vunpack.c.l.b16 %v243
    %v761 = vunpack.c.l.b16 %v244
    %v762 = vunpack.c.l.b16 %v245
    %v763 = vunpack.c.l.b16 %v246
    %v764 = vunpack.c.l.b16 %v247
    %v765 = vunpack.c.l.b16 %v248
    %v766 = vunpack.c.l.b16 %v249
    %v767 = vunpack.c.l.b16 %v250
    %v768 = vunpack.c.l.b16 %v251
    %v769 = vunpack.c.l.b16 %v252
    %v770 = vunpack.c.l.b16 %v253
    %v771 = vunpack.c.l.b16 %v254
    %v772 = vunpack.c.l.b16 %v255
    %v773 = vunpack.c.l.b16 %v256
    %v774 = vunpack.c.l.b16 %v257
    %v775 = vunpack.c.l.b16 %v258
    %v776 = vunpack.c.l.b16 %v259
    %v777 = vunpack.c.l.b16 %v260
    %v778 = vunpack.c.l.b16 %v261
    %v779 = vunpack.c.l.b16 %v262
    %v780 = vunpack.c.l.b16 %v263
    %v781 = vunpack.c.l.b16 %v264
    %v782 = vunpack.c.l.b16 %v265
    %v783 = vunpack.c.l.b16 %v266
    %v784 = vunpack.c.l.b16 %v267
    %v785 = vunpack.c.l.b16 %v268
    %v786 = vunpack.c.l.b16 %v269
    %v787 = vunpack.c.l.b16 %v270
    %v788 = vunpack.c.l.b16 %v271
    %v789 = vunpack.c.l.b16 %v272
    %v790 = vunpack.c.l.b16 %v273
    %v791 = vunpack.c.l.b16 %v274
    %v792 = vunpack.c.l.b16 %v275
    %v793 = vunpack.c.l.b16 %v276
    %v794 = vunpack.c.l.b16 %v277
    %v795 = vpack.c.b16 %v540, %v539
    %v796 = vpack.c.b16 %v542, %v541
    %v797 = vpack.c.b16 %v544, %v543
    %v798 = vpack.c.b16 %v546, %v545
    %v799 = vpack.c.b16 %v548, %v547
    %v800 = vpack.c.b16 %v550, %v549
    %v801 = vpack.c.b16 %v552, %v551
    %v802 = vpack.c.b16 %v554, %v553
    %v803 = vpack.c.b16 %v556, %v555
    %v804 = vpack.c.b16 %v558, %v557
    %v805 = vpack.c.b16 %v560, %v559
    %v806 = vpack.c.b16 %v562, %v561
    %v807 = vpack.c.b16 %v564, %v563
    %v808 = vpack.c.b16 %v566, %v565
    %v809 = vpack.c.b16 %v568, %v567
    %v810 = vpack.c.b16 %v570, %v569
    %v811 = vpack.c.b16 %v572, %v571
    %v812 = vpack.c.b16 %v574, %v573
    %v813 = vpack.c.b16 %v576, %v575
    %v814 = vpack.c.b16 %v578, %v577
    %v815 = vpack.c.b16 %v580, %v579
    %v816 = vpack.c.b16 %v582, %v581
    %v817 = vpack.c.b16 %v584, %v583
    %v818 = vpack.c.b16 %v586, %v585
    %v819 = vpack.c.b16 %v588, %v587
    %v820 = vpack.c.b16 %v590, %v589
    %v821 = vpack.c.b16 %v592, %v591
    %v822 = vpack.c.b16 %v594, %v593
    %v823 = vpack.c.b16 %v596, %v595
    %v824 = vpack.c.b16 %v598, %v597
    %v825 = vpack.c.b16 %v600, %v599
    %v826 = vpack.c.b16 %v602, %v601
    %v827 = vpack.c.b16 %v604, %v603
    %v828 = vpack.c.b16 %v606, %v605
    %v829 = vpack.c.b16 %v608, %v607
    %v830 = vpack.c.b16 %v610, %v609
    %v831 = vpack.c.b16 %v612, %v611
    %v832 = vpack.c.b16 %v614, %v613
    %v833 = vpack.c.b16 %v616, %v615
    %v834 = vpack.c.b16 %v618, %v617
    %v835 = vpack.c.b16 %v620, %v619
    %v836 = vpack.c.b16 %v622, %v621
    %v837 = vpack.c.b16 %v624, %v623
    %v838 = vpack.c.b16 %v626, %v625
    %v839 = vpack.c.b16 %v628, %v627
    %v840 = vpack.c.b16 %v630, %v629
    %v841 = vpack.c.b16 %v632, %v631
    %v842 = vpack.c.b16 %v634, %v633
    %v843 = vpack.c.b16 %v636, %v635
    %v844 = vpack.c.b16 %v638, %v637
    %v845 = vpack.c.b16 %v640, %v639
    %v846 = vpack.c.b16 %v642, %v641
    %v847 = vpack.c.b16 %v644, %v643
    %v848 = vpack.c.b16 %v646, %v645
    %v849 = vpack.c.b16 %v648, %v647
    %v850 = vpack.c.b16 %v650, %v649
    %v851 = vpack.c.b16 %v652, %v651
    %v852 = vpack.c.b16 %v654, %v653
    %v853 = vpack.c.b16 %v656, %v655
    %v854 = vpack.c.b16 %v658, %v657
    %v855 = vpack.c.b16 %v660, %v659
    %v856 = vpack.c.b16 %v662, %v661
    %v857 = vpack.c.b16 %v664, %v663
    %v858 = vpack.c.b16 %v666, %v665
    %v859 = vpack.c.b16 %v668, %v667
    %v860 = vpack.c.b16 %v670, %v669
    %v861 = vpack.c.b16 %v672, %v671
    %v862 = vpack.c.b16 %v674, %v673
    %v863 = vpack.c.b16 %v676, %v675
    %v864 = vpack.c.b16 %v678, %v677
    %v865 = vpack.c.b16 %v680, %v679
    %v866 = vpack.c.b16 %v682, %v681
    %v867 = vpack.c.b16 %v684, %v683
    %v868 = vpack.c.b16 %v686, %v685
    %v869 = vpack.c.b16 %v688, %v687
    %v870 = vpack.c.b16 %v690, %v689
    %v871 = vpack.c.b16 %v692, %v691
    %v872 = vpack.c.b16 %v694, %v693
    %v873 = vpack.c.b16 %v696, %v695
    %v874 = vpack.c.b16 %v698, %v697
    %v875 = vpack.c.b16 %v700, %v699
    %v876 = vpack.c.b16 %v702, %v701
    %v877 = vpack.c.b16 %v704, %v703
    %v878 = vpack.c.b16 %v706, %v705
    %v879 = vpack.c.b16 %v708, %v707
    %v880 = vpack.c.b16 %v710, %v709
    %v881 = vpack.c.b16 %v712, %v711
    %v882 = vpack.c.b16 %v714, %v713
    %v883 = vpack.c.b16 %v716, %v715
    %v884 = vpack.c.b16 %v718, %v717
    %v885 = vpack.c.b16 %v720, %v719
    %v886 = vpack.c.b16 %v722, %v721
    %v887 = vpack.c.b16 %v724, %v723
    %v888 = vpack.c.b16 %v726, %v725
    %v889 = vpack.c.b16 %v728, %v727
    %v890 = vpack.c.b16 %v730, %v729
    %v891 = vpack.c.b16 %v732, %v731
    %v892 = vpack.c.b16 %v734, %v733
    %v893 = vpack.c.b16 %v736, %v735
    %v894 = vpack.c.b16 %v738, %v737
    %v895 = vpack.c.b16 %v740, %v739
    %v896 = vpack.c.b16 %v742, %v741
    %v897 = vpack.c.b16 %v744, %v743
    %v898 = vpack.c.b16 %v746, %v745
    %v899 = vpack.c.b16 %v748, %v747
    %v900 = vpack.c.b16 %v750, %v749
    %v901 = vpack.c.b16 %v752, %v751
    %v902 = vpack.c.b16 %v754, %v753
    %v903 = vpack.c.b16 %v756, %v755
    %v904 = vpack.c.b16 %v758, %v757
    %v905 = vpack.c.b16 %v760, %v759
    %v906 = vpack.c.b16 %v762, %v761
    %v907 = vpack.c.b16 %v764, %v763
    %v908 = vpack.c.b16 %v766, %v765
    %v909 = vpack.c.b16 %v768, %v767
    %v910 = vpack.c.b16 %v770, %v769
    %v911 = vpack.c.b16 %v772, %v771
    %v912 = vpack.c.b16 %v774, %v773
    %v913 = vpack.c.b16 %v776, %v775
    %v914 = vpack.c.b16 %v778, %v777
    %v915 = vpack.c.b16 %v780, %v779
    %v916 = vpack.c.b16 %v782, %v781
    %v917 = vpack.c.b16 %v784, %v783
    %v918 = vpack.c.b16 %v786, %v785
    %v919 = vpack.c.b16 %v788, %v787
    %v920 = vpack.c.b16 %v790, %v789
    %v921 = vpack.c.b16 %v792, %v791
    %v922 = vpack.c.b16 %v794, %v793
    %v928 = vunpack.c.l.b16 %v278
    %v929 = vunpack.c.l.b16 %v279
    %v930 = vunpack.c.l.b16 %v280
    %v931 = vunpack.c.l.b16 %v281
    %v932 = vunpack.c.l.b16 %v282
    %v933 = vpack.c.b16 %v929, %v928
    %v934 = vpack.c.b16 %v931, %v930
    %v935 = vpack.c.b16 %v932, %v932
    %vm938 = vcmask 302080
    %v940 = vsel %vm938, %v795, 0
    %v943 = vsel %vm938, %v796, 0
    %v946 = vsel %vm938, %v797, 0
    %v949 = vsel %vm938, %v798, 0
    %v952 = vsel %vm938, %v799, 0
    %v955 = vsel %vm938, %v800, 0
    %v958 = vsel %vm938, %v801, 0
    %v961 = vsel %vm938, %v802, 0
    %v964 = vsel %vm938, %v803, 0
    %v967 = vsel %vm938, %v804, 0
    %v970 = vsel %vm938, %v805, 0
    %v973 = vsel %vm938, %v806, 0
    %v976 = vsel %vm938, %v807, 0
    %v979 = vsel %vm938, %v808, 0
    %v982 = vsel %vm938, %v809, 0
    %v985 = vsel %vm938, %v810, 0
    %v988 = vsel %vm938, %v811, 0
    %v991 = vsel %vm938, %v812, 0
    %v994 = vsel %vm938, %v813, 0
    %v997 = vsel %vm938, %v814, 0
    %v1000 = vsel %vm938, %v815, 0
    %v1003 = vsel %vm938, %v816, 0
    %v1006 = vsel %vm938, %v817, 0
    %v1009 = vsel %vm938, %v818, 0
    %v1012 = vsel %vm938, %v819, 0
    %v1015 = vsel %vm938, %v820, 0
    %v1018 = vsel %vm938, %v821, 0
    %v1021 = vsel %vm938, %v822, 0
    %v1024 = vsel %vm938, %v823, 0
    %v1027 = vsel %vm938, %v824, 0
    %v1030 = vsel %vm938, %v825, 0
    %v1033 = vsel %vm938, %v826, 0
    %v1036 = vsel %vm938, %v827, 0
    %v1039 = vsel %vm938, %v828, 0
    %v1042 = vsel %vm938, %v829, 0
    %v1045 = vsel %vm938, %v830, 0
    %v1048 = vsel %vm938, %v831, 0
    %v1051 = vsel %vm938, %v832, 0
    %v1054 = vsel %vm938, %v833, 0
    %v1057 = vsel %vm938, %v834, 0
    %v1060 = vsel %vm938, %v835, 0
    %v1063 = vsel %vm938, %v836, 0
    %v1066 = vsel %vm938, %v837, 0
    %v1069 = vsel %vm938, %v838, 0
    %v1072 = vsel %vm938, %v839, 0
    %v1075 = vsel %vm938, %v840, 0
    %v1078 = vsel %vm938, %v841, 0
    %v1081 = vsel %vm938, %v842, 0
    %v1084 = vsel %vm938, %v843, 0
    %v1087 = vsel %vm938, %v844, 0
    %v1090 = vsel %vm938, %v845, 0
    %v1093 = vsel %vm938, %v846, 0
    %v1096 = vsel %vm938, %v847, 0
    %v1099 = vsel %vm938, %v848, 0
    %v1102 = vsel %vm938, %v849, 0
    %v1105 = vsel %vm938, %v850, 0
    %v1108 = vsel %vm938, %v851, 0
    %v1111 = vsel %vm938, %v852, 0
    %v1114 = vsel %vm938, %v853, 0
    %v1117 = vsel %vm938, %v854, 0
    %v1120 = vsel %vm938, %v855, 0
    %v1123 = vsel %vm938, %v856, 0
    %v1126 = vsel %vm938, %v857, 0
    %v1129 = vsel %vm938, %v858, 0
    %v1132 = vsel %vm938, %v859, 0
    %v1135 = vsel %vm938, %v860, 0
    %v1138 = vsel %vm938, %v861, 0
    %v1141 = vsel %vm938, %v862, 0
    %v1144 = vsel %vm938, %v863, 0
    %v1147 = vsel %vm938, %v864, 0
    %v1150 = vsel %vm938, %v865, 0
    %v1153 = vsel %vm938, %v866, 0
    %v1156 = vsel %vm938, %v867, 0
    %v1159 = vsel %vm938, %v868, 0
    %v1162 = vsel %vm938, %v869, 0
    %v1165 = vsel %vm938, %v870, 0
    %v1168 = vsel %vm938, %v871, 0
    %v1171 = vsel %vm938, %v872, 0
    %v1174 = vsel %vm938, %v873, 0
    %v1177 = vsel %vm938, %v874, 0
    %v1180 = vsel %vm938, %v875, 0
    %v1183 = vsel %vm938, %v876, 0
    %v1186 = vsel %vm938, %v877, 0
    %v1189 = vsel %vm938, %v878, 0
    %v1192 = vsel %vm938, %v879, 0
    %v1195 = vsel %vm938, %v880, 0
    %v1198 = vsel %vm938, %v881, 0
    %v1201 = vsel %vm938, %v882, 0
    %v1204 = vsel %vm938, %v883, 0
    %v1207 = vsel %vm938, %v884, 0
    %v1210 = vsel %vm938, %v885, 0
    %v1213 = vsel %vm938, %v886, 0
    %v1216 = vsel %vm938, %v887, 0
    %v1219 = vsel %vm938, %v888, 0
    %v1222 = vsel %vm938, %v889, 0
    %v1225 = vsel %vm938, %v890, 0
    %v1228 = vsel %vm938, %v891, 0
    %v1231 = vsel %vm938, %v892, 0
    %v1234 = vsel %vm938, %v893, 0
    %v1237 = vsel %vm938, %v894, 0
    %v1240 = vsel %vm938, %v895, 0
    %v1243 = vsel %vm938, %v896, 0
    %v1246 = vsel %vm938, %v897, 0
    %v1249 = vsel %vm938, %v898, 0
    %v1252 = vsel %vm938, %v899, 0
    %v1255 = vsel %vm938, %v900, 0
    %v1258 = vsel %vm938, %v901, 0
    %v1261 = vsel %vm938, %v902, 0
    %v1264 = vsel %vm938, %v903, 0
    %v1267 = vsel %vm938, %v904, 0
    %v1270 = vsel %vm938, %v905, 0
    %v1273 = vsel %vm938, %v906, 0
    %v1276 = vsel %vm938, %v907, 0
    %v1279 = vsel %vm938, %v908, 0
    %v1282 = vsel %vm938, %v909, 0
    %v1285 = vsel %vm938, %v910, 0
    %v1288 = vsel %vm938, %v911, 0
    %v1291 = vsel %vm938, %v912, 0
    %v1294 = vsel %vm938, %v913, 0
    %v1297 = vsel %vm938, %v914, 0
    %v1300 = vsel %vm938, %v915, 0
    %v1303 = vsel %vm938, %v916, 0
    %v1306 = vsel %vm938, %v917, 0
    %v1309 = vsel %vm938, %v918, 0
    %v1312 = vsel %vm938, %v919, 0
    %v1315 = vsel %vm938, %v920, 0
    %v1318 = vsel %vm938, %v921, 0
    %v1321 = vsel %vm938, %v922, 0
    %vm1323 = vcmask 1041408
    %vm1324 = vcmask 1042432
    %v1325 = vsel %vm1323, 4294967295, 65535
    %v1326 = vsel %vm1324, %v1325, 0
    %v1328 = vand.u32 %v935, %v1326
    %1330 = vmatpush.bf16.msra.mxu0 0
    %1331 = vmatpush.bf16.msra.mxu0 0
    %1332 = vmatpush.bf16.msra.mxu0 0
    %1333 = vmatpush.bf16.msra.mxu0 0
    %1334 = vmatpush.bf16.msra.mxu0 0
    %1335 = vmatpush.bf16.msra.mxu0 %v1328
    %1336 = vmatpush.bf16.msra.mxu0 %v934
    %1337 = vmatpush.bf16.msra.mxu0 %v933
    %1338 = vmatmul.bf16.gmra.mxu0 %v940
    %v1339 = vpop.f32.mrf.mxu0
    %v1340 = vadd.f32 0.0, %v1339
    %v1341 = vpop.f32.mrf.mxu0
    %v1342 = vadd.f32 0.0, %v1341
    %1343 = vmatmul.bf16.gmra.mxu0 %v943
    %v1344 = vpop.f32.mrf.mxu0
    %v1345 = vadd.f32 0.0, %v1344
    %v1346 = vpop.f32.mrf.mxu0
    %v1347 = vadd.f32 0.0, %v1346
    %1348 = vmatmul.bf16.gmra.mxu0 %v946
    %v1349 = vpop.f32.mrf.mxu0
    %v1350 = vadd.f32 0.0, %v1349
    %v1351 = vpop.f32.mrf.mxu0
    %v1352 = vadd.f32 0.0, %v1351
    %1353 = vmatmul.bf16.gmra.mxu0 %v949
    %v1354 = vpop.f32.mrf.mxu0
    %v1355 = vadd.f32 0.0, %v1354
    %v1356 = vpop.f32.mrf.mxu0
    %v1357 = vadd.f32 0.0, %v1356
    %1358 = vmatmul.bf16.gmra.mxu0 %v952
    %v1359 = vpop.f32.mrf.mxu0
    %v1360 = vadd.f32 0.0, %v1359
    %v1361 = vpop.f32.mrf.mxu0
    %v1362 = vadd.f32 0.0, %v1361
    %1363 = vmatmul.bf16.gmra.mxu0 %v955
    %v1364 = vpop.f32.mrf.mxu0
    %v1365 = vadd.f32 0.0, %v1364
    %v1366 = vpop.f32.mrf.mxu0
    %v1367 = vadd.f32 0.0, %v1366
    %1368 = vmatmul.bf16.gmra.mxu0 %v958
    %v1369 = vpop.f32.mrf.mxu0
    %v1370 = vadd.f32 0.0, %v1369
    %v1371 = vpop.f32.mrf.mxu0
    %v1372 = vadd.f32 0.0, %v1371
    %1373 = vmatmul.bf16.gmra.mxu0 %v961
    %v1374 = vpop.f32.mrf.mxu0
    %v1375 = vadd.f32 0.0, %v1374
    %v1376 = vpop.f32.mrf.mxu0
    %v1377 = vadd.f32 0.0, %v1376
    %1378 = vmatmul.bf16.gmra.mxu0 %v964
    %v1379 = vpop.f32.mrf.mxu0
    %v1380 = vadd.f32 0.0, %v1379
    %v1381 = vpop.f32.mrf.mxu0
    %v1382 = vadd.f32 0.0, %v1381
    %1383 = vmatmul.bf16.gmra.mxu0 %v967
    %v1384 = vpop.f32.mrf.mxu0
    %v1385 = vadd.f32 0.0, %v1384
    %v1386 = vpop.f32.mrf.mxu0
    %v1387 = vadd.f32 0.0, %v1386
    %1388 = vmatmul.bf16.gmra.mxu0 %v970
    %v1389 = vpop.f32.mrf.mxu0
    %v1390 = vadd.f32 0.0, %v1389
    %v1391 = vpop.f32.mrf.mxu0
    %v1392 = vadd.f32 0.0, %v1391
    %1393 = vmatmul.bf16.gmra.mxu0 %v973
    %v1394 = vpop.f32.mrf.mxu0
    %v1395 = vadd.f32 0.0, %v1394
    %v1396 = vpop.f32.mrf.mxu0
    %v1397 = vadd.f32 0.0, %v1396
    %1398 = vmatmul.bf16.gmra.mxu0 %v976
    %v1399 = vpop.f32.mrf.mxu0
    %v1400 = vadd.f32 0.0, %v1399
    %v1401 = vpop.f32.mrf.mxu0
    %v1402 = vadd.f32 0.0, %v1401
    %1403 = vmatmul.bf16.gmra.mxu0 %v979
    %v1404 = vpop.f32.mrf.mxu0
    %v1405 = vadd.f32 0.0, %v1404
    %v1406 = vpop.f32.mrf.mxu0
    %v1407 = vadd.f32 0.0, %v1406
    %1408 = vmatmul.bf16.gmra.mxu0 %v982
    %v1409 = vpop.f32.mrf.mxu0
    %v1410 = vadd.f32 0.0, %v1409
    %v1411 = vpop.f32.mrf.mxu0
    %v1412 = vadd.f32 0.0, %v1411
    %1413 = vmatmul.bf16.gmra.mxu0 %v985
    %v1414 = vpop.f32.mrf.mxu0
    %v1415 = vadd.f32 0.0, %v1414
    %v1416 = vpop.f32.mrf.mxu0
    %v1417 = vadd.f32 0.0, %v1416
    %1418 = vmatmul.bf16.gmra.mxu0 %v988
    %v1419 = vpop.f32.mrf.mxu0
    %v1420 = vadd.f32 0.0, %v1419
    %v1421 = vpop.f32.mrf.mxu0
    %v1422 = vadd.f32 0.0, %v1421
    %1423 = vmatmul.bf16.gmra.mxu0 %v991
    %v1424 = vpop.f32.mrf.mxu0
    %v1425 = vadd.f32 0.0, %v1424
    %v1426 = vpop.f32.mrf.mxu0
    %v1427 = vadd.f32 0.0, %v1426
    %1428 = vmatmul.bf16.gmra.mxu0 %v994
    %v1429 = vpop.f32.mrf.mxu0
    %v1430 = vadd.f32 0.0, %v1429
    %v1431 = vpop.f32.mrf.mxu0
    %v1432 = vadd.f32 0.0, %v1431
    %1433 = vmatmul.bf16.gmra.mxu0 %v997
    %v1434 = vpop.f32.mrf.mxu0
    %v1435 = vadd.f32 0.0, %v1434
    %v1436 = vpop.f32.mrf.mxu0
    %v1437 = vadd.f32 0.0, %v1436
    %1438 = vmatmul.bf16.gmra.mxu0 %v1000
    %v1439 = vpop.f32.mrf.mxu0
    %v1440 = vadd.f32 0.0, %v1439
    %v1441 = vpop.f32.mrf.mxu0
    %v1442 = vadd.f32 0.0, %v1441
    %1443 = vmatmul.bf16.gmra.mxu0 %v1003
    %v1444 = vpop.f32.mrf.mxu0
    %v1445 = vadd.f32 0.0, %v1444
    %v1446 = vpop.f32.mrf.mxu0
    %v1447 = vadd.f32 0.0, %v1446
    %1448 = vmatmul.bf16.gmra.mxu0 %v1006
    %v1449 = vpop.f32.mrf.mxu0
    %v1450 = vadd.f32 0.0, %v1449
    %v1451 = vpop.f32.mrf.mxu0
    %v1452 = vadd.f32 0.0, %v1451
    %1453 = vmatmul.bf16.gmra.mxu0 %v1009
    %v1454 = vpop.f32.mrf.mxu0
    %v1455 = vadd.f32 0.0, %v1454
    %v1456 = vpop.f32.mrf.mxu0
    %v1457 = vadd.f32 0.0, %v1456
    %1458 = vmatmul.bf16.gmra.mxu0 %v1012
    %v1459 = vpop.f32.mrf.mxu0
    %v1460 = vadd.f32 0.0, %v1459
    %v1461 = vpop.f32.mrf.mxu0
    %v1462 = vadd.f32 0.0, %v1461
    %1463 = vmatmul.bf16.gmra.mxu0 %v1015
    %v1464 = vpop.f32.mrf.mxu0
    %v1465 = vadd.f32 0.0, %v1464
    %v1466 = vpop.f32.mrf.mxu0
    %v1467 = vadd.f32 0.0, %v1466
    %1468 = vmatmul.bf16.gmra.mxu0 %v1018
    %v1469 = vpop.f32.mrf.mxu0
    %v1470 = vadd.f32 0.0, %v1469
    %v1471 = vpop.f32.mrf.mxu0
    %v1472 = vadd.f32 0.0, %v1471
    %1473 = vmatmul.bf16.gmra.mxu0 %v1021
    %v1474 = vpop.f32.mrf.mxu0
    %v1475 = vadd.f32 0.0, %v1474
    %v1476 = vpop.f32.mrf.mxu0
    %v1477 = vadd.f32 0.0, %v1476
    %1478 = vmatmul.bf16.gmra.mxu0 %v1024
    %v1479 = vpop.f32.mrf.mxu0
    %v1480 = vadd.f32 0.0, %v1479
    %v1481 = vpop.f32.mrf.mxu0
    %v1482 = vadd.f32 0.0, %v1481
    %1483 = vmatmul.bf16.gmra.mxu0 %v1027
    %v1484 = vpop.f32.mrf.mxu0
    %v1485 = vadd.f32 0.0, %v1484
    %v1486 = vpop.f32.mrf.mxu0
    %v1487 = vadd.f32 0.0, %v1486
    %1488 = vmatmul.bf16.gmra.mxu0 %v1030
    %v1489 = vpop.f32.mrf.mxu0
    %v1490 = vadd.f32 0.0, %v1489
    %v1491 = vpop.f32.mrf.mxu0
    %v1492 = vadd.f32 0.0, %v1491
    %1493 = vmatmul.bf16.gmra.mxu0 %v1033
    %v1494 = vpop.f32.mrf.mxu0
    %v1495 = vadd.f32 0.0, %v1494
    %v1496 = vpop.f32.mrf.mxu0
    %v1497 = vadd.f32 0.0, %v1496
    %1498 = vmatmul.bf16.gmra.mxu0 %v1036
    %v1499 = vpop.f32.mrf.mxu0
    %v1500 = vadd.f32 0.0, %v1499
    %v1501 = vpop.f32.mrf.mxu0
    %v1502 = vadd.f32 0.0, %v1501
    %1503 = vmatmul.bf16.gmra.mxu0 %v1039
    %v1504 = vpop.f32.mrf.mxu0
    %v1505 = vadd.f32 0.0, %v1504
    %v1506 = vpop.f32.mrf.mxu0
    %v1507 = vadd.f32 0.0, %v1506
    %1508 = vmatmul.bf16.gmra.mxu0 %v1042
    %v1509 = vpop.f32.mrf.mxu0
    %v1510 = vadd.f32 0.0, %v1509
    %v1511 = vpop.f32.mrf.mxu0
    %v1512 = vadd.f32 0.0, %v1511
    %1513 = vmatmul.bf16.gmra.mxu0 %v1045
    %v1514 = vpop.f32.mrf.mxu0
    %v1515 = vadd.f32 0.0, %v1514
    %v1516 = vpop.f32.mrf.mxu0
    %v1517 = vadd.f32 0.0, %v1516
    %1518 = vmatmul.bf16.gmra.mxu0 %v1048
    %v1519 = vpop.f32.mrf.mxu0
    %v1520 = vadd.f32 0.0, %v1519
    %v1521 = vpop.f32.mrf.mxu0
    %v1522 = vadd.f32 0.0, %v1521
    %1523 = vmatmul.bf16.gmra.mxu0 %v1051
    %v1524 = vpop.f32.mrf.mxu0
    %v1525 = vadd.f32 0.0, %v1524
    %v1526 = vpop.f32.mrf.mxu0
    %v1527 = vadd.f32 0.0, %v1526
    %1528 = vmatmul.bf16.gmra.mxu0 %v1054
    %v1529 = vpop.f32.mrf.mxu0
    %v1530 = vadd.f32 0.0, %v1529
    %v1531 = vpop.f32.mrf.mxu0
    %v1532 = vadd.f32 0.0, %v1531
    %1533 = vmatmul.bf16.gmra.mxu0 %v1057
    %v1534 = vpop.f32.mrf.mxu0
    %v1535 = vadd.f32 0.0, %v1534
    %v1536 = vpop.f32.mrf.mxu0
    %v1537 = vadd.f32 0.0, %v1536
    %1538 = vmatmul.bf16.gmra.mxu0 %v1060
    %v1539 = vpop.f32.mrf.mxu0
    %v1540 = vadd.f32 0.0, %v1539
    %v1541 = vpop.f32.mrf.mxu0
    %v1542 = vadd.f32 0.0, %v1541
    %1543 = vmatmul.bf16.gmra.mxu0 %v1063
    %v1544 = vpop.f32.mrf.mxu0
    %v1545 = vadd.f32 0.0, %v1544
    %v1546 = vpop.f32.mrf.mxu0
    %v1547 = vadd.f32 0.0, %v1546
    %1548 = vmatmul.bf16.gmra.mxu0 %v1066
    %v1549 = vpop.f32.mrf.mxu0
    %v1550 = vadd.f32 0.0, %v1549
    %v1551 = vpop.f32.mrf.mxu0
    %v1552 = vadd.f32 0.0, %v1551
    %1553 = vmatmul.bf16.gmra.mxu0 %v1069
    %v1554 = vpop.f32.mrf.mxu0
    %v1555 = vadd.f32 0.0, %v1554
    %v1556 = vpop.f32.mrf.mxu0
    %v1557 = vadd.f32 0.0, %v1556
    %1558 = vmatmul.bf16.gmra.mxu0 %v1072
    %v1559 = vpop.f32.mrf.mxu0
    %v1560 = vadd.f32 0.0, %v1559
    %v1561 = vpop.f32.mrf.mxu0
    %v1562 = vadd.f32 0.0, %v1561
    %1563 = vmatmul.bf16.gmra.mxu0 %v1075
    %v1564 = vpop.f32.mrf.mxu0
    %v1565 = vadd.f32 0.0, %v1564
    %v1566 = vpop.f32.mrf.mxu0
    %v1567 = vadd.f32 0.0, %v1566
    %1568 = vmatmul.bf16.gmra.mxu0 %v1078
    %v1569 = vpop.f32.mrf.mxu0
    %v1570 = vadd.f32 0.0, %v1569
    %v1571 = vpop.f32.mrf.mxu0
    %v1572 = vadd.f32 0.0, %v1571
    %1573 = vmatmul.bf16.gmra.mxu0 %v1081
    %v1574 = vpop.f32.mrf.mxu0
    %v1575 = vadd.f32 0.0, %v1574
    %v1576 = vpop.f32.mrf.mxu0
    %v1577 = vadd.f32 0.0, %v1576
    %1578 = vmatmul.bf16.gmra.mxu0 %v1084
    %v1579 = vpop.f32.mrf.mxu0
    %v1580 = vadd.f32 0.0, %v1579
    %v1581 = vpop.f32.mrf.mxu0
    %v1582 = vadd.f32 0.0, %v1581
    %1583 = vmatmul.bf16.gmra.mxu0 %v1087
    %v1584 = vpop.f32.mrf.mxu0
    %v1585 = vadd.f32 0.0, %v1584
    %v1586 = vpop.f32.mrf.mxu0
    %v1587 = vadd.f32 0.0, %v1586
    %1588 = vmatmul.bf16.gmra.mxu0 %v1090
    %v1589 = vpop.f32.mrf.mxu0
    %v1590 = vadd.f32 0.0, %v1589
    %v1591 = vpop.f32.mrf.mxu0
    %v1592 = vadd.f32 0.0, %v1591
    %1593 = vmatmul.bf16.gmra.mxu0 %v1093
    %v1594 = vpop.f32.mrf.mxu0
    %v1595 = vadd.f32 0.0, %v1594
    %v1596 = vpop.f32.mrf.mxu0
    %v1597 = vadd.f32 0.0, %v1596
    %1598 = vmatmul.bf16.gmra.mxu0 %v1096
    %v1599 = vpop.f32.mrf.mxu0
    %v1600 = vadd.f32 0.0, %v1599
    %v1601 = vpop.f32.mrf.mxu0
    %v1602 = vadd.f32 0.0, %v1601
    %1603 = vmatmul.bf16.gmra.mxu0 %v1099
    %v1604 = vpop.f32.mrf.mxu0
    %v1605 = vadd.f32 0.0, %v1604
    %v1606 = vpop.f32.mrf.mxu0
    %v1607 = vadd.f32 0.0, %v1606
    %1608 = vmatmul.bf16.gmra.mxu0 %v1102
    %v1609 = vpop.f32.mrf.mxu0
    %v1610 = vadd.f32 0.0, %v1609
    %v1611 = vpop.f32.mrf.mxu0
    %v1612 = vadd.f32 0.0, %v1611
    %1613 = vmatmul.bf16.gmra.mxu0 %v1105
    %v1614 = vpop.f32.mrf.mxu0
    %v1615 = vadd.f32 0.0, %v1614
    %v1616 = vpop.f32.mrf.mxu0
    %v1617 = vadd.f32 0.0, %v1616
    %1618 = vmatmul.bf16.gmra.mxu0 %v1108
    %v1619 = vpop.f32.mrf.mxu0
    %v1620 = vadd.f32 0.0, %v1619
    %v1621 = vpop.f32.mrf.mxu0
    %v1622 = vadd.f32 0.0, %v1621
    %1623 = vmatmul.bf16.gmra.mxu0 %v1111
    %v1624 = vpop.f32.mrf.mxu0
    %v1625 = vadd.f32 0.0, %v1624
    %v1626 = vpop.f32.mrf.mxu0
    %v1627 = vadd.f32 0.0, %v1626
    %1628 = vmatmul.bf16.gmra.mxu0 %v1114
    %v1629 = vpop.f32.mrf.mxu0
    %v1630 = vadd.f32 0.0, %v1629
    %v1631 = vpop.f32.mrf.mxu0
    %v1632 = vadd.f32 0.0, %v1631
    %1633 = vmatmul.bf16.gmra.mxu0 %v1117
    %v1634 = vpop.f32.mrf.mxu0
    %v1635 = vadd.f32 0.0, %v1634
    %v1636 = vpop.f32.mrf.mxu0
    %v1637 = vadd.f32 0.0, %v1636
    %1638 = vmatmul.bf16.gmra.mxu0 %v1120
    %v1639 = vpop.f32.mrf.mxu0
    %v1640 = vadd.f32 0.0, %v1639
    %v1641 = vpop.f32.mrf.mxu0
    %v1642 = vadd.f32 0.0, %v1641
    %1643 = vmatmul.bf16.gmra.mxu0 %v1123
    %v1644 = vpop.f32.mrf.mxu0
    %v1645 = vadd.f32 0.0, %v1644
    %v1646 = vpop.f32.mrf.mxu0
    %v1647 = vadd.f32 0.0, %v1646
    %1648 = vmatmul.bf16.gmra.mxu0 %v1126
    %v1649 = vpop.f32.mrf.mxu0
    %v1650 = vadd.f32 0.0, %v1649
    %v1651 = vpop.f32.mrf.mxu0
    %v1652 = vadd.f32 0.0, %v1651
    %1653 = vmatmul.bf16.gmra.mxu0 %v1129
    %v1654 = vpop.f32.mrf.mxu0
    %v1655 = vadd.f32 0.0, %v1654
    %v1656 = vpop.f32.mrf.mxu0
    %v1657 = vadd.f32 0.0, %v1656
    %1658 = vmatmul.bf16.gmra.mxu0 %v1132
    %v1659 = vpop.f32.mrf.mxu0
    %v1660 = vadd.f32 0.0, %v1659
    %v1661 = vpop.f32.mrf.mxu0
    %v1662 = vadd.f32 0.0, %v1661
    %1663 = vmatmul.bf16.gmra.mxu0 %v1135
    %v1664 = vpop.f32.mrf.mxu0
    %v1665 = vadd.f32 0.0, %v1664
    %v1666 = vpop.f32.mrf.mxu0
    %v1667 = vadd.f32 0.0, %v1666
    %1668 = vmatmul.bf16.gmra.mxu0 %v1138
    %v1669 = vpop.f32.mrf.mxu0
    %v1670 = vadd.f32 0.0, %v1669
    %v1671 = vpop.f32.mrf.mxu0
    %v1672 = vadd.f32 0.0, %v1671
    %1673 = vmatmul.bf16.gmra.mxu0 %v1141
    %v1674 = vpop.f32.mrf.mxu0
    %v1675 = vadd.f32 0.0, %v1674
    %v1676 = vpop.f32.mrf.mxu0
    %v1677 = vadd.f32 0.0, %v1676
    %1678 = vmatmul.bf16.gmra.mxu0 %v1144
    %v1679 = vpop.f32.mrf.mxu0
    %v1680 = vadd.f32 0.0, %v1679
    %v1681 = vpop.f32.mrf.mxu0
    %v1682 = vadd.f32 0.0, %v1681
    %1683 = vmatmul.bf16.gmra.mxu0 %v1147
    %v1684 = vpop.f32.mrf.mxu0
    %v1685 = vadd.f32 0.0, %v1684
    %v1686 = vpop.f32.mrf.mxu0
    %v1687 = vadd.f32 0.0, %v1686
    %1688 = vmatmul.bf16.gmra.mxu0 %v1150
    %v1689 = vpop.f32.mrf.mxu0
    %v1690 = vadd.f32 0.0, %v1689
    %v1691 = vpop.f32.mrf.mxu0
    %v1692 = vadd.f32 0.0, %v1691
    %1693 = vmatmul.bf16.gmra.mxu0 %v1153
    %v1694 = vpop.f32.mrf.mxu0
    %v1695 = vadd.f32 0.0, %v1694
    %v1696 = vpop.f32.mrf.mxu0
    %v1697 = vadd.f32 0.0, %v1696
    %1698 = vmatmul.bf16.gmra.mxu0 %v1156
    %v1699 = vpop.f32.mrf.mxu0
    %v1700 = vadd.f32 0.0, %v1699
    %v1701 = vpop.f32.mrf.mxu0
    %v1702 = vadd.f32 0.0, %v1701
    %1703 = vmatmul.bf16.gmra.mxu0 %v1159
    %v1704 = vpop.f32.mrf.mxu0
    %v1705 = vadd.f32 0.0, %v1704
    %v1706 = vpop.f32.mrf.mxu0
    %v1707 = vadd.f32 0.0, %v1706
    %1708 = vmatmul.bf16.gmra.mxu0 %v1162
    %v1709 = vpop.f32.mrf.mxu0
    %v1710 = vadd.f32 0.0, %v1709
    %v1711 = vpop.f32.mrf.mxu0
    %v1712 = vadd.f32 0.0, %v1711
    %1713 = vmatmul.bf16.gmra.mxu0 %v1165
    %v1714 = vpop.f32.mrf.mxu0
    %v1715 = vadd.f32 0.0, %v1714
    %v1716 = vpop.f32.mrf.mxu0
    %v1717 = vadd.f32 0.0, %v1716
    %1718 = vmatmul.bf16.gmra.mxu0 %v1168
    %v1719 = vpop.f32.mrf.mxu0
    %v1720 = vadd.f32 0.0, %v1719
    %v1721 = vpop.f32.mrf.mxu0
    %v1722 = vadd.f32 0.0, %v1721
    %1723 = vmatmul.bf16.gmra.mxu0 %v1171
    %v1724 = vpop.f32.mrf.mxu0
    %v1725 = vadd.f32 0.0, %v1724
    %v1726 = vpop.f32.mrf.mxu0
    %v1727 = vadd.f32 0.0, %v1726
    %1728 = vmatmul.bf16.gmra.mxu0 %v1174
    %v1729 = vpop.f32.mrf.mxu0
    %v1730 = vadd.f32 0.0, %v1729
    %v1731 = vpop.f32.mrf.mxu0
    %v1732 = vadd.f32 0.0, %v1731
    %1733 = vmatmul.bf16.gmra.mxu0 %v1177
    %v1734 = vpop.f32.mrf.mxu0
    %v1735 = vadd.f32 0.0, %v1734
    %v1736 = vpop.f32.mrf.mxu0
    %v1737 = vadd.f32 0.0, %v1736
    %1738 = vmatmul.bf16.gmra.mxu0 %v1180
    %v1739 = vpop.f32.mrf.mxu0
    %v1740 = vadd.f32 0.0, %v1739
    %v1741 = vpop.f32.mrf.mxu0
    %v1742 = vadd.f32 0.0, %v1741
    %1743 = vmatmul.bf16.gmra.mxu0 %v1183
    %v1744 = vpop.f32.mrf.mxu0
    %v1745 = vadd.f32 0.0, %v1744
    %v1746 = vpop.f32.mrf.mxu0
    %v1747 = vadd.f32 0.0, %v1746
    %1748 = vmatmul.bf16.gmra.mxu0 %v1186
    %v1749 = vpop.f32.mrf.mxu0
    %v1750 = vadd.f32 0.0, %v1749
    %v1751 = vpop.f32.mrf.mxu0
    %v1752 = vadd.f32 0.0, %v1751
    %1753 = vmatmul.bf16.gmra.mxu0 %v1189
    %v1754 = vpop.f32.mrf.mxu0
    %v1755 = vadd.f32 0.0, %v1754
    %v1756 = vpop.f32.mrf.mxu0
    %v1757 = vadd.f32 0.0, %v1756
    %1758 = vmatmul.bf16.gmra.mxu0 %v1192
    %v1759 = vpop.f32.mrf.mxu0
    %v1760 = vadd.f32 0.0, %v1759
    %v1761 = vpop.f32.mrf.mxu0
    %v1762 = vadd.f32 0.0, %v1761
    %1763 = vmatmul.bf16.gmra.mxu0 %v1195
    %v1764 = vpop.f32.mrf.mxu0
    %v1765 = vadd.f32 0.0, %v1764
    %v1766 = vpop.f32.mrf.mxu0
    %v1767 = vadd.f32 0.0, %v1766
    %1768 = vmatmul.bf16.gmra.mxu0 %v1198
    %v1769 = vpop.f32.mrf.mxu0
    %v1770 = vadd.f32 0.0, %v1769
    %v1771 = vpop.f32.mrf.mxu0
    %v1772 = vadd.f32 0.0, %v1771
    %1773 = vmatmul.bf16.gmra.mxu0 %v1201
    %v1774 = vpop.f32.mrf.mxu0
    %v1775 = vadd.f32 0.0, %v1774
    %v1776 = vpop.f32.mrf.mxu0
    %v1777 = vadd.f32 0.0, %v1776
    %1778 = vmatmul.bf16.gmra.mxu0 %v1204
    %v1779 = vpop.f32.mrf.mxu0
    %v1780 = vadd.f32 0.0, %v1779
    %v1781 = vpop.f32.mrf.mxu0
    %v1782 = vadd.f32 0.0, %v1781
    %1783 = vmatmul.bf16.gmra.mxu0 %v1207
    %v1784 = vpop.f32.mrf.mxu0
    %v1785 = vadd.f32 0.0, %v1784
    %v1786 = vpop.f32.mrf.mxu0
    %v1787 = vadd.f32 0.0, %v1786
    %1788 = vmatmul.bf16.gmra.mxu0 %v1210
    %v1789 = vpop.f32.mrf.mxu0
    %v1790 = vadd.f32 0.0, %v1789
    %v1791 = vpop.f32.mrf.mxu0
    %v1792 = vadd.f32 0.0, %v1791
    %1793 = vmatmul.bf16.gmra.mxu0 %v1213
    %v1794 = vpop.f32.mrf.mxu0
    %v1795 = vadd.f32 0.0, %v1794
    %v1796 = vpop.f32.mrf.mxu0
    %v1797 = vadd.f32 0.0, %v1796
    %1798 = vmatmul.bf16.gmra.mxu0 %v1216
    %v1799 = vpop.f32.mrf.mxu0
    %v1800 = vadd.f32 0.0, %v1799
    %v1801 = vpop.f32.mrf.mxu0
    %v1802 = vadd.f32 0.0, %v1801
    %1803 = vmatmul.bf16.gmra.mxu0 %v1219
    %v1804 = vpop.f32.mrf.mxu0
    %v1805 = vadd.f32 0.0, %v1804
    %v1806 = vpop.f32.mrf.mxu0
    %v1807 = vadd.f32 0.0, %v1806
    %1808 = vmatmul.bf16.gmra.mxu0 %v1222
    %v1809 = vpop.f32.mrf.mxu0
    %v1810 = vadd.f32 0.0, %v1809
    %v1811 = vpop.f32.mrf.mxu0
    %v1812 = vadd.f32 0.0, %v1811
    %1813 = vmatmul.bf16.gmra.mxu0 %v1225
    %v1814 = vpop.f32.mrf.mxu0
    %v1815 = vadd.f32 0.0, %v1814
    %v1816 = vpop.f32.mrf.mxu0
    %v1817 = vadd.f32 0.0, %v1816
    %1818 = vmatmul.bf16.gmra.mxu0 %v1228
    %v1819 = vpop.f32.mrf.mxu0
    %v1820 = vadd.f32 0.0, %v1819
    %v1821 = vpop.f32.mrf.mxu0
    %v1822 = vadd.f32 0.0, %v1821
    %1823 = vmatmul.bf16.gmra.mxu0 %v1231
    %v1824 = vpop.f32.mrf.mxu0
    %v1825 = vadd.f32 0.0, %v1824
    %v1826 = vpop.f32.mrf.mxu0
    %v1827 = vadd.f32 0.0, %v1826
    %1828 = vmatmul.bf16.gmra.mxu0 %v1234
    %v1829 = vpop.f32.mrf.mxu0
    %v1830 = vadd.f32 0.0, %v1829
    %v1831 = vpop.f32.mrf.mxu0
    %v1832 = vadd.f32 0.0, %v1831
    %1833 = vmatmul.bf16.gmra.mxu0 %v1237
    %v1834 = vpop.f32.mrf.mxu0
    %v1835 = vadd.f32 0.0, %v1834
    %v1836 = vpop.f32.mrf.mxu0
    %v1837 = vadd.f32 0.0, %v1836
    %1838 = vmatmul.bf16.gmra.mxu0 %v1240
    %v1839 = vpop.f32.mrf.mxu0
    %v1840 = vadd.f32 0.0, %v1839
    %v1841 = vpop.f32.mrf.mxu0
    %v1842 = vadd.f32 0.0, %v1841
    %1843 = vmatmul.bf16.gmra.mxu0 %v1243
    %v1844 = vpop.f32.mrf.mxu0
    %v1845 = vadd.f32 0.0, %v1844
    %v1846 = vpop.f32.mrf.mxu0
    %v1847 = vadd.f32 0.0, %v1846
    %1848 = vmatmul.bf16.gmra.mxu0 %v1246
    %v1849 = vpop.f32.mrf.mxu0
    %v1850 = vadd.f32 0.0, %v1849
    %v1851 = vpop.f32.mrf.mxu0
    %v1852 = vadd.f32 0.0, %v1851
    %1853 = vmatmul.bf16.gmra.mxu0 %v1249
    %v1854 = vpop.f32.mrf.mxu0
    %v1855 = vadd.f32 0.0, %v1854
    %v1856 = vpop.f32.mrf.mxu0
    %v1857 = vadd.f32 0.0, %v1856
    %1858 = vmatmul.bf16.gmra.mxu0 %v1252
    %v1859 = vpop.f32.mrf.mxu0
    %v1860 = vadd.f32 0.0, %v1859
    %v1861 = vpop.f32.mrf.mxu0
    %v1862 = vadd.f32 0.0, %v1861
    %1863 = vmatmul.bf16.gmra.mxu0 %v1255
    %v1864 = vpop.f32.mrf.mxu0
    %v1865 = vadd.f32 0.0, %v1864
    %v1866 = vpop.f32.mrf.mxu0
    %v1867 = vadd.f32 0.0, %v1866
    %1868 = vmatmul.bf16.gmra.mxu0 %v1258
    %v1869 = vpop.f32.mrf.mxu0
    %v1870 = vadd.f32 0.0, %v1869
    %v1871 = vpop.f32.mrf.mxu0
    %v1872 = vadd.f32 0.0, %v1871
    %1873 = vmatmul.bf16.gmra.mxu0 %v1261
    %v1874 = vpop.f32.mrf.mxu0
    %v1875 = vadd.f32 0.0, %v1874
    %v1876 = vpop.f32.mrf.mxu0
    %v1877 = vadd.f32 0.0, %v1876
    %1878 = vmatmul.bf16.gmra.mxu0 %v1264
    %v1879 = vpop.f32.mrf.mxu0
    %v1880 = vadd.f32 0.0, %v1879
    %v1881 = vpop.f32.mrf.mxu0
    %v1882 = vadd.f32 0.0, %v1881
    %1883 = vmatmul.bf16.gmra.mxu0 %v1267
    %v1884 = vpop.f32.mrf.mxu0
    %v1885 = vadd.f32 0.0, %v1884
    %v1886 = vpop.f32.mrf.mxu0
    %v1887 = vadd.f32 0.0, %v1886
    %1888 = vmatmul.bf16.gmra.mxu0 %v1270
    %v1889 = vpop.f32.mrf.mxu0
    %v1890 = vadd.f32 0.0, %v1889
    %v1891 = vpop.f32.mrf.mxu0
    %v1892 = vadd.f32 0.0, %v1891
    %1893 = vmatmul.bf16.gmra.mxu0 %v1273
    %v1894 = vpop.f32.mrf.mxu0
    %v1895 = vadd.f32 0.0, %v1894
    %v1896 = vpop.f32.mrf.mxu0
    %v1897 = vadd.f32 0.0, %v1896
    %1898 = vmatmul.bf16.gmra.mxu0 %v1276
    %v1899 = vpop.f32.mrf.mxu0
    %v1900 = vadd.f32 0.0, %v1899
    %v1901 = vpop.f32.mrf.mxu0
    %v1902 = vadd.f32 0.0, %v1901
    %1903 = vmatmul.bf16.gmra.mxu0 %v1279
    %v1904 = vpop.f32.mrf.mxu0
    %v1905 = vadd.f32 0.0, %v1904
    %v1906 = vpop.f32.mrf.mxu0
    %v1907 = vadd.f32 0.0, %v1906
    %1908 = vmatmul.bf16.gmra.mxu0 %v1282
    %v1909 = vpop.f32.mrf.mxu0
    %v1910 = vadd.f32 0.0, %v1909
    %v1911 = vpop.f32.mrf.mxu0
    %v1912 = vadd.f32 0.0, %v1911
    %1913 = vmatmul.bf16.gmra.mxu0 %v1285
    %v1914 = vpop.f32.mrf.mxu0
    %v1915 = vadd.f32 0.0, %v1914
    %v1916 = vpop.f32.mrf.mxu0
    %v1917 = vadd.f32 0.0, %v1916
    %1918 = vmatmul.bf16.gmra.mxu0 %v1288
    %v1919 = vpop.f32.mrf.mxu0
    %v1920 = vadd.f32 0.0, %v1919
    %v1921 = vpop.f32.mrf.mxu0
    %v1922 = vadd.f32 0.0, %v1921
    %1923 = vmatmul.bf16.gmra.mxu0 %v1291
    %v1924 = vpop.f32.mrf.mxu0
    %v1925 = vadd.f32 0.0, %v1924
    %v1926 = vpop.f32.mrf.mxu0
    %v1927 = vadd.f32 0.0, %v1926
    %1928 = vmatmul.bf16.gmra.mxu0 %v1294
    %v1929 = vpop.f32.mrf.mxu0
    %v1930 = vadd.f32 0.0, %v1929
    %v1931 = vpop.f32.mrf.mxu0
    %v1932 = vadd.f32 0.0, %v1931
    %1933 = vmatmul.bf16.gmra.mxu0 %v1297
    %v1934 = vpop.f32.mrf.mxu0
    %v1935 = vadd.f32 0.0, %v1934
    %v1936 = vpop.f32.mrf.mxu0
    %v1937 = vadd.f32 0.0, %v1936
    %1938 = vmatmul.bf16.gmra.mxu0 %v1300
    %v1939 = vpop.f32.mrf.mxu0
    %v1940 = vadd.f32 0.0, %v1939
    %v1941 = vpop.f32.mrf.mxu0
    %v1942 = vadd.f32 0.0, %v1941
    %1943 = vmatmul.bf16.gmra.mxu0 %v1303
    %v1944 = vpop.f32.mrf.mxu0
    %v1945 = vadd.f32 0.0, %v1944
    %v1946 = vpop.f32.mrf.mxu0
    %v1947 = vadd.f32 0.0, %v1946
    %1948 = vmatmul.bf16.gmra.mxu0 %v1306
    %v1949 = vpop.f32.mrf.mxu0
    %v1950 = vadd.f32 0.0, %v1949
    %v1951 = vpop.f32.mrf.mxu0
    %v1952 = vadd.f32 0.0, %v1951
    %1953 = vmatmul.bf16.gmra.mxu0 %v1309
    %v1954 = vpop.f32.mrf.mxu0
    %v1955 = vadd.f32 0.0, %v1954
    %v1956 = vpop.f32.mrf.mxu0
    %v1957 = vadd.f32 0.0, %v1956
    %1958 = vmatmul.bf16.gmra.mxu0 %v1312
    %v1959 = vpop.f32.mrf.mxu0
    %v1960 = vadd.f32 0.0, %v1959
    %v1961 = vpop.f32.mrf.mxu0
    %v1962 = vadd.f32 0.0, %v1961
    %1963 = vmatmul.bf16.gmra.mxu0 %v1315
    %v1964 = vpop.f32.mrf.mxu0
    %v1965 = vadd.f32 0.0, %v1964
    %v1966 = vpop.f32.mrf.mxu0
    %v1967 = vadd.f32 0.0, %v1966
    %1968 = vmatmul.bf16.gmra.mxu0 %v1318
    %v1969 = vpop.f32.mrf.mxu0
    %v1970 = vadd.f32 0.0, %v1969
    %v1971 = vpop.f32.mrf.mxu0
    %v1972 = vadd.f32 0.0, %v1971
    %1973 = vmatmul.bf16.gmra.mxu0 %v1321
    %v1974 = vpop.f32.mrf.mxu0
    %v1975 = vadd.f32 0.0, %v1974
    %v1976 = vpop.f32.mrf.mxu0
    %v1977 = vadd.f32 0.0, %v1976
    %1978 = vdwg.mxu0
    %v1979 = vmax.f32 %v1340, 0.0
    %v1980 = vmax.f32 %v1342, 0.0
    %v1981 = vmax.f32 %v1345, 0.0
    %v1982 = vmax.f32 %v1347, 0.0
    %v1983 = vmax.f32 %v1350, 0.0
    %v1984 = vmax.f32 %v1352, 0.0
    %v1985 = vmax.f32 %v1355, 0.0
    %v1986 = vmax.f32 %v1357, 0.0
    %v1987 = vmax.f32 %v1360, 0.0
    %v1988 = vmax.f32 %v1362, 0.0
    %v1989 = vmax.f32 %v1365, 0.0
    %v1990 = vmax.f32 %v1367, 0.0
    %v1991 = vmax.f32 %v1370, 0.0
    %v1992 = vmax.f32 %v1372, 0.0
    %v1993 = vmax.f32 %v1375, 0.0
    %v1994 = vmax.f32 %v1377, 0.0
    %v1995 = vmax.f32 %v1380, 0.0
    %v1996 = vmax.f32 %v1382, 0.0
    %v1997 = vmax.f32 %v1385, 0.0
    %v1998 = vmax.f32 %v1387, 0.0
    %v1999 = vmax.f32 %v1390, 0.0
    %v2000 = vmax.f32 %v1392, 0.0
    %v2001 = vmax.f32 %v1395, 0.0
    %v2002 = vmax.f32 %v1397, 0.0
    %v2003 = vmax.f32 %v1400, 0.0
    %v2004 = vmax.f32 %v1402, 0.0
    %v2005 = vmax.f32 %v1405, 0.0
    %v2006 = vmax.f32 %v1407, 0.0
    %v2007 = vmax.f32 %v1410, 0.0
    %v2008 = vmax.f32 %v1412, 0.0
    %v2009 = vmax.f32 %v1415, 0.0
    %v2010 = vmax.f32 %v1417, 0.0
    %v2011 = vmax.f32 %v1420, 0.0
    %v2012 = vmax.f32 %v1422, 0.0
    %v2013 = vmax.f32 %v1425, 0.0
    %v2014 = vmax.f32 %v1427, 0.0
    %v2015 = vmax.f32 %v1430, 0.0
    %v2016 = vmax.f32 %v1432, 0.0
    %v2017 = vmax.f32 %v1435, 0.0
    %v2018 = vmax.f32 %v1437, 0.0
    %v2019 = vmax.f32 %v1440, 0.0
    %v2020 = vmax.f32 %v1442, 0.0
    %v2021 = vmax.f32 %v1445, 0.0
    %v2022 = vmax.f32 %v1447, 0.0
    %v2023 = vmax.f32 %v1450, 0.0
    %v2024 = vmax.f32 %v1452, 0.0
    %v2025 = vmax.f32 %v1455, 0.0
    %v2026 = vmax.f32 %v1457, 0.0
    %v2027 = vmax.f32 %v1460, 0.0
    %v2028 = vmax.f32 %v1462, 0.0
    %v2029 = vmax.f32 %v1465, 0.0
    %v2030 = vmax.f32 %v1467, 0.0
    %v2031 = vmax.f32 %v1470, 0.0
    %v2032 = vmax.f32 %v1472, 0.0
    %v2033 = vmax.f32 %v1475, 0.0
    %v2034 = vmax.f32 %v1477, 0.0
    %v2035 = vmax.f32 %v1480, 0.0
    %v2036 = vmax.f32 %v1482, 0.0
    %v2037 = vmax.f32 %v1485, 0.0
    %v2038 = vmax.f32 %v1487, 0.0
    %v2039 = vmax.f32 %v1490, 0.0
    %v2040 = vmax.f32 %v1492, 0.0
    %v2041 = vmax.f32 %v1495, 0.0
    %v2042 = vmax.f32 %v1497, 0.0
    %v2043 = vmax.f32 %v1500, 0.0
    %v2044 = vmax.f32 %v1502, 0.0
    %v2045 = vmax.f32 %v1505, 0.0
    %v2046 = vmax.f32 %v1507, 0.0
    %v2047 = vmax.f32 %v1510, 0.0
    %v2048 = vmax.f32 %v1512, 0.0
    %v2049 = vmax.f32 %v1515, 0.0
    %v2050 = vmax.f32 %v1517, 0.0
    %v2051 = vmax.f32 %v1520, 0.0
    %v2052 = vmax.f32 %v1522, 0.0
    %v2053 = vmax.f32 %v1525, 0.0
    %v2054 = vmax.f32 %v1527, 0.0
    %v2055 = vmax.f32 %v1530, 0.0
    %v2056 = vmax.f32 %v1532, 0.0
    %v2057 = vmax.f32 %v1535, 0.0
    %v2058 = vmax.f32 %v1537, 0.0
    %v2059 = vmax.f32 %v1540, 0.0
    %v2060 = vmax.f32 %v1542, 0.0
    %v2061 = vmax.f32 %v1545, 0.0
    %v2062 = vmax.f32 %v1547, 0.0
    %v2063 = vmax.f32 %v1550, 0.0
    %v2064 = vmax.f32 %v1552, 0.0
    %v2065 = vmax.f32 %v1555, 0.0
    %v2066 = vmax.f32 %v1557, 0.0
    %v2067 = vmax.f32 %v1560, 0.0
    %v2068 = vmax.f32 %v1562, 0.0
    %v2069 = vmax.f32 %v1565, 0.0
    %v2070 = vmax.f32 %v1567, 0.0
    %v2071 = vmax.f32 %v1570, 0.0
    %v2072 = vmax.f32 %v1572, 0.0
    %v2073 = vmax.f32 %v1575, 0.0
    %v2074 = vmax.f32 %v1577, 0.0
    %v2075 = vmax.f32 %v1580, 0.0
    %v2076 = vmax.f32 %v1582, 0.0
    %v2077 = vmax.f32 %v1585, 0.0
    %v2078 = vmax.f32 %v1587, 0.0
    %v2079 = vmax.f32 %v1590, 0.0
    %v2080 = vmax.f32 %v1592, 0.0
    %v2081 = vmax.f32 %v1595, 0.0
    %v2082 = vmax.f32 %v1597, 0.0
    %v2083 = vmax.f32 %v1600, 0.0
    %v2084 = vmax.f32 %v1602, 0.0
    %v2085 = vmax.f32 %v1605, 0.0
    %v2086 = vmax.f32 %v1607, 0.0
    %v2087 = vmax.f32 %v1610, 0.0
    %v2088 = vmax.f32 %v1612, 0.0
    %v2089 = vmax.f32 %v1615, 0.0
    %v2090 = vmax.f32 %v1617, 0.0
    %v2091 = vmax.f32 %v1620, 0.0
    %v2092 = vmax.f32 %v1622, 0.0
    %v2093 = vmax.f32 %v1625, 0.0
    %v2094 = vmax.f32 %v1627, 0.0
    %v2095 = vmax.f32 %v1630, 0.0
    %v2096 = vmax.f32 %v1632, 0.0
    %v2097 = vmax.f32 %v1635, 0.0
    %v2098 = vmax.f32 %v1637, 0.0
    %v2099 = vmax.f32 %v1640, 0.0
    %v2100 = vmax.f32 %v1642, 0.0
    %v2101 = vmax.f32 %v1645, 0.0
    %v2102 = vmax.f32 %v1647, 0.0
    %v2103 = vmax.f32 %v1650, 0.0
    %v2104 = vmax.f32 %v1652, 0.0
    %v2105 = vmax.f32 %v1655, 0.0
    %v2106 = vmax.f32 %v1657, 0.0
    %v2107 = vmax.f32 %v1660, 0.0
    %v2108 = vmax.f32 %v1662, 0.0
    %v2109 = vmax.f32 %v1665, 0.0
    %v2110 = vmax.f32 %v1667, 0.0
    %v2111 = vmax.f32 %v1670, 0.0
    %v2112 = vmax.f32 %v1672, 0.0
    %v2113 = vmax.f32 %v1675, 0.0
    %v2114 = vmax.f32 %v1677, 0.0
    %v2115 = vmax.f32 %v1680, 0.0
    %v2116 = vmax.f32 %v1682, 0.0
    %v2117 = vmax.f32 %v1685, 0.0
    %v2118 = vmax.f32 %v1687, 0.0
    %v2119 = vmax.f32 %v1690, 0.0
    %v2120 = vmax.f32 %v1692, 0.0
    %v2121 = vmax.f32 %v1695, 0.0
    %v2122 = vmax.f32 %v1697, 0.0
    %v2123 = vmax.f32 %v1700, 0.0
    %v2124 = vmax.f32 %v1702, 0.0
    %v2125 = vmax.f32 %v1705, 0.0
    %v2126 = vmax.f32 %v1707, 0.0
    %v2127 = vmax.f32 %v1710, 0.0
    %v2128 = vmax.f32 %v1712, 0.0
    %v2129 = vmax.f32 %v1715, 0.0
    %v2130 = vmax.f32 %v1717, 0.0
    %v2131 = vmax.f32 %v1720, 0.0
    %v2132 = vmax.f32 %v1722, 0.0
    %v2133 = vmax.f32 %v1725, 0.0
    %v2134 = vmax.f32 %v1727, 0.0
    %v2135 = vmax.f32 %v1730, 0.0
    %v2136 = vmax.f32 %v1732, 0.0
    %v2137 = vmax.f32 %v1735, 0.0
    %v2138 = vmax.f32 %v1737, 0.0
    %v2139 = vmax.f32 %v1740, 0.0
    %v2140 = vmax.f32 %v1742, 0.0
    %v2141 = vmax.f32 %v1745, 0.0
    %v2142 = vmax.f32 %v1747, 0.0
    %v2143 = vmax.f32 %v1750, 0.0
    %v2144 = vmax.f32 %v1752, 0.0
    %v2145 = vmax.f32 %v1755, 0.0
    %v2146 = vmax.f32 %v1757, 0.0
    %v2147 = vmax.f32 %v1760, 0.0
    %v2148 = vmax.f32 %v1762, 0.0
    %v2149 = vmax.f32 %v1765, 0.0
    %v2150 = vmax.f32 %v1767, 0.0
    %v2151 = vmax.f32 %v1770, 0.0
    %v2152 = vmax.f32 %v1772, 0.0
    %v2153 = vmax.f32 %v1775, 0.0
    %v2154 = vmax.f32 %v1777, 0.0
    %v2155 = vmax.f32 %v1780, 0.0
    %v2156 = vmax.f32 %v1782, 0.0
    %v2157 = vmax.f32 %v1785, 0.0
    %v2158 = vmax.f32 %v1787, 0.0
    %v2159 = vmax.f32 %v1790, 0.0
    %v2160 = vmax.f32 %v1792, 0.0
    %v2161 = vmax.f32 %v1795, 0.0
    %v2162 = vmax.f32 %v1797, 0.0
    %v2163 = vmax.f32 %v1800, 0.0
    %v2164 = vmax.f32 %v1802, 0.0
    %v2165 = vmax.f32 %v1805, 0.0
    %v2166 = vmax.f32 %v1807, 0.0
    %v2167 = vmax.f32 %v1810, 0.0
    %v2168 = vmax.f32 %v1812, 0.0
    %v2169 = vmax.f32 %v1815, 0.0
    %v2170 = vmax.f32 %v1817, 0.0
    %v2171 = vmax.f32 %v1820, 0.0
    %v2172 = vmax.f32 %v1822, 0.0
    %v2173 = vmax.f32 %v1825, 0.0
    %v2174 = vmax.f32 %v1827, 0.0
    %v2175 = vmax.f32 %v1830, 0.0
    %v2176 = vmax.f32 %v1832, 0.0
    %v2177 = vmax.f32 %v1835, 0.0
    %v2178 = vmax.f32 %v1837, 0.0
    %v2179 = vmax.f32 %v1840, 0.0
    %v2180 = vmax.f32 %v1842, 0.0
    %v2181 = vmax.f32 %v1845, 0.0
    %v2182 = vmax.f32 %v1847, 0.0
    %v2183 = vmax.f32 %v1850, 0.0
    %v2184 = vmax.f32 %v1852, 0.0
    %v2185 = vmax.f32 %v1855, 0.0
    %v2186 = vmax.f32 %v1857, 0.0
    %v2187 = vmax.f32 %v1860, 0.0
    %v2188 = vmax.f32 %v1862, 0.0
    %v2189 = vmax.f32 %v1865, 0.0
    %v2190 = vmax.f32 %v1867, 0.0
    %v2191 = vmax.f32 %v1870, 0.0
    %v2192 = vmax.f32 %v1872, 0.0
    %v2193 = vmax.f32 %v1875, 0.0
    %v2194 = vmax.f32 %v1877, 0.0
    %v2195 = vmax.f32 %v1880, 0.0
    %v2196 = vmax.f32 %v1882, 0.0
    %v2197 = vmax.f32 %v1885, 0.0
    %v2198 = vmax.f32 %v1887, 0.0
    %v2199 = vmax.f32 %v1890, 0.0
    %v2200 = vmax.f32 %v1892, 0.0
    %v2201 = vmax.f32 %v1895, 0.0
    %v2202 = vmax.f32 %v1897, 0.0
    %v2203 = vmax.f32 %v1900, 0.0
    %v2204 = vmax.f32 %v1902, 0.0
    %v2205 = vmax.f32 %v1905, 0.0
    %v2206 = vmax.f32 %v1907, 0.0
    %v2207 = vmax.f32 %v1910, 0.0
    %v2208 = vmax.f32 %v1912, 0.0
    %v2209 = vmax.f32 %v1915, 0.0
    %v2210 = vmax.f32 %v1917, 0.0
    %v2211 = vmax.f32 %v1920, 0.0
    %v2212 = vmax.f32 %v1922, 0.0
    %v2213 = vmax.f32 %v1925, 0.0
    %v2214 = vmax.f32 %v1927, 0.0
    %v2215 = vmax.f32 %v1930, 0.0
    %v2216 = vmax.f32 %v1932, 0.0
    %v2217 = vmax.f32 %v1935, 0.0
    %v2218 = vmax.f32 %v1937, 0.0
    %v2219 = vmax.f32 %v1940, 0.0
    %v2220 = vmax.f32 %v1942, 0.0
    %v2221 = vmax.f32 %v1945, 0.0
    %v2222 = vmax.f32 %v1947, 0.0
    %v2223 = vmax.f32 %v1950, 0.0
    %v2224 = vmax.f32 %v1952, 0.0
    %v2225 = vmax.f32 %v1955, 0.0
    %v2226 = vmax.f32 %v1957, 0.0
    %v2227 = vmax.f32 %v1960, 0.0
    %v2228 = vmax.f32 %v1962, 0.0
    %v2229 = vmax.f32 %v1965, 0.0
    %v2230 = vmax.f32 %v1967, 0.0
    %v2231 = vmax.f32 %v1970, 0.0
    %v2232 = vmax.f32 %v1972, 0.0
    %v2233 = vmax.f32 %v1975, 0.0
    %v2234 = vmax.f32 %v1977, 0.0
    %v2235 = vld [vmem:[%s1] sm:$0xff]
    %v2236 = vld [vmem:[%s1 + $0x8] sm:$0xff]
    %v2237 = vld [vmem:[%s1 + $0x10] sm:$0xff]
    %v2238 = vld [vmem:[%s1 + $0x18] sm:$0xff]
    %v2239 = vld [vmem:[%s1 + $0x20] sm:$0xff]
    %v2240 = vld [vmem:[%s1 + $0x28] sm:$0xff]
    %v2241 = vld [vmem:[%s1 + $0x30] sm:$0xff]
    %v2242 = vld [vmem:[%s1 + $0x38] sm:$0xff]
    %v2243 = vpack.c.bf16 %v1980, %v1979
    %v2244 = vpack.c.bf16 %v1982, %v1981
    %v2245 = vpack.c.bf16 %v1984, %v1983
    %v2246 = vpack.c.bf16 %v1986, %v1985
    %v2247 = vpack.c.bf16 %v1988, %v1987
    %v2248 = vpack.c.bf16 %v1990, %v1989
    %v2249 = vpack.c.bf16 %v1992, %v1991
    %v2250 = vpack.c.bf16 %v1994, %v1993
    %v2251 = vpack.c.bf16 %v1996, %v1995
    %v2252 = vpack.c.bf16 %v1998, %v1997
    %v2253 = vpack.c.bf16 %v2000, %v1999
    %v2254 = vpack.c.bf16 %v2002, %v2001
    %v2255 = vpack.c.bf16 %v2004, %v2003
    %v2256 = vpack.c.bf16 %v2006, %v2005
    %v2257 = vpack.c.bf16 %v2008, %v2007
    %v2258 = vpack.c.bf16 %v2010, %v2009
    %v2259 = vpack.c.bf16 %v2012, %v2011
    %v2260 = vpack.c.bf16 %v2014, %v2013
    %v2261 = vpack.c.bf16 %v2016, %v2015
    %v2262 = vpack.c.bf16 %v2018, %v2017
    %v2263 = vpack.c.bf16 %v2020, %v2019
    %v2264 = vpack.c.bf16 %v2022, %v2021
    %v2265 = vpack.c.bf16 %v2024, %v2023
    %v2266 = vpack.c.bf16 %v2026, %v2025
    %v2267 = vpack.c.bf16 %v2028, %v2027
    %v2268 = vpack.c.bf16 %v2030, %v2029
    %v2269 = vpack.c.bf16 %v2032, %v2031
    %v2270 = vpack.c.bf16 %v2034, %v2033
    %v2271 = vpack.c.bf16 %v2036, %v2035
    %v2272 = vpack.c.bf16 %v2038, %v2037
    %v2273 = vpack.c.bf16 %v2040, %v2039
    %v2274 = vpack.c.bf16 %v2042, %v2041
    %v2275 = vpack.c.bf16 %v2044, %v2043
    %v2276 = vpack.c.bf16 %v2046, %v2045
    %v2277 = vpack.c.bf16 %v2048, %v2047
    %v2278 = vpack.c.bf16 %v2050, %v2049
    %v2279 = vpack.c.bf16 %v2052, %v2051
    %v2280 = vpack.c.bf16 %v2054, %v2053
    %v2281 = vpack.c.bf16 %v2056, %v2055
    %v2282 = vpack.c.bf16 %v2058, %v2057
    %v2283 = vpack.c.bf16 %v2060, %v2059
    %v2284 = vpack.c.bf16 %v2062, %v2061
    %v2285 = vpack.c.bf16 %v2064, %v2063
    %v2286 = vpack.c.bf16 %v2066, %v2065
    %v2287 = vpack.c.bf16 %v2068, %v2067
    %v2288 = vpack.c.bf16 %v2070, %v2069
    %v2289 = vpack.c.bf16 %v2072, %v2071
    %v2290 = vpack.c.bf16 %v2074, %v2073
    %v2291 = vpack.c.bf16 %v2076, %v2075
    %v2292 = vpack.c.bf16 %v2078, %v2077
    %v2293 = vpack.c.bf16 %v2080, %v2079
    %v2294 = vpack.c.bf16 %v2082, %v2081
    %v2295 = vpack.c.bf16 %v2084, %v2083
    %v2296 = vpack.c.bf16 %v2086, %v2085
    %v2297 = vpack.c.bf16 %v2088, %v2087
    %v2298 = vpack.c.bf16 %v2090, %v2089
    %v2299 = vpack.c.bf16 %v2092, %v2091
    %v2300 = vpack.c.bf16 %v2094, %v2093
    %v2301 = vpack.c.bf16 %v2096, %v2095
    %v2302 = vpack.c.bf16 %v2098, %v2097
    %v2303 = vpack.c.bf16 %v2100, %v2099
    %v2304 = vpack.c.bf16 %v2102, %v2101
    %v2305 = vpack.c.bf16 %v2104, %v2103
    %v2306 = vpack.c.bf16 %v2106, %v2105
    %v2307 = vpack.c.bf16 %v2108, %v2107
    %v2308 = vpack.c.bf16 %v2110, %v2109
    %v2309 = vpack.c.bf16 %v2112, %v2111
    %v2310 = vpack.c.bf16 %v2114, %v2113
    %v2311 = vpack.c.bf16 %v2116, %v2115
    %v2312 = vpack.c.bf16 %v2118, %v2117
    %v2313 = vpack.c.bf16 %v2120, %v2119
    %v2314 = vpack.c.bf16 %v2122, %v2121
    %v2315 = vpack.c.bf16 %v2124, %v2123
    %v2316 = vpack.c.bf16 %v2126, %v2125
    %v2317 = vpack.c.bf16 %v2128, %v2127
    %v2318 = vpack.c.bf16 %v2130, %v2129
    %v2319 = vpack.c.bf16 %v2132, %v2131
    %v2320 = vpack.c.bf16 %v2134, %v2133
    %v2321 = vpack.c.bf16 %v2136, %v2135
    %v2322 = vpack.c.bf16 %v2138, %v2137
    %v2323 = vpack.c.bf16 %v2140, %v2139
    %v2324 = vpack.c.bf16 %v2142, %v2141
    %v2325 = vpack.c.bf16 %v2144, %v2143
    %v2326 = vpack.c.bf16 %v2146, %v2145
    %v2327 = vpack.c.bf16 %v2148, %v2147
    %v2328 = vpack.c.bf16 %v2150, %v2149
    %v2329 = vpack.c.bf16 %v2152, %v2151
    %v2330 = vpack.c.bf16 %v2154, %v2153
    %v2331 = vpack.c.bf16 %v2156, %v2155
    %v2332 = vpack.c.bf16 %v2158, %v2157
    %v2333 = vpack.c.bf16 %v2160, %v2159
    %v2334 = vpack.c.bf16 %v2162, %v2161
    %v2335 = vpack.c.bf16 %v2164, %v2163
    %v2336 = vpack.c.bf16 %v2166, %v2165
    %v2337 = vpack.c.bf16 %v2168, %v2167
    %v2338 = vpack.c.bf16 %v2170, %v2169
    %v2339 = vpack.c.bf16 %v2172, %v2171
    %v2340 = vpack.c.bf16 %v2174, %v2173
    %v2341 = vpack.c.bf16 %v2176, %v2175
    %v2342 = vpack.c.bf16 %v2178, %v2177
    %v2343 = vpack.c.bf16 %v2180, %v2179
    %v2344 = vpack.c.bf16 %v2182, %v2181
    %v2345 = vpack.c.bf16 %v2184, %v2183
    %v2346 = vpack.c.bf16 %v2186, %v2185
    %v2347 = vpack.c.bf16 %v2188, %v2187
    %v2348 = vpack.c.bf16 %v2190, %v2189
    %v2349 = vpack.c.bf16 %v2192, %v2191
    %v2350 = vpack.c.bf16 %v2194, %v2193
    %v2351 = vpack.c.bf16 %v2196, %v2195
    %v2352 = vpack.c.bf16 %v2198, %v2197
    %v2353 = vpack.c.bf16 %v2200, %v2199
    %v2354 = vpack.c.bf16 %v2202, %v2201
    %v2355 = vpack.c.bf16 %v2204, %v2203
    %v2356 = vpack.c.bf16 %v2206, %v2205
    %v2357 = vpack.c.bf16 %v2208, %v2207
    %v2358 = vpack.c.bf16 %v2210, %v2209
    %v2359 = vpack.c.bf16 %v2212, %v2211
    %v2360 = vpack.c.bf16 %v2214, %v2213
    %v2361 = vpack.c.bf16 %v2216, %v2215
    %v2362 = vpack.c.bf16 %v2218, %v2217
    %v2363 = vpack.c.bf16 %v2220, %v2219
    %v2364 = vpack.c.bf16 %v2222, %v2221
    %v2365 = vpack.c.bf16 %v2224, %v2223
    %v2366 = vpack.c.bf16 %v2226, %v2225
    %v2367 = vpack.c.bf16 %v2228, %v2227
    %v2368 = vpack.c.bf16 %v2230, %v2229
    %v2369 = vpack.c.bf16 %v2232, %v2231
    %v2370 = vpack.c.bf16 %v2234, %v2233
    %v2379 = vunpack.c.l.b16 %v2235
    %v2380 = vunpack.c.h.b16 %v2235
    %v2381 = vunpack.c.l.b16 %v2236
    %v2382 = vunpack.c.h.b16 %v2236
    %v2383 = vunpack.c.l.b16 %v2237
    %v2384 = vunpack.c.h.b16 %v2237
    %v2385 = vunpack.c.l.b16 %v2238
    %v2386 = vunpack.c.h.b16 %v2238
    %v2387 = vunpack.c.l.b16 %v2239
    %v2388 = vunpack.c.h.b16 %v2239
    %v2389 = vunpack.c.l.b16 %v2240
    %v2390 = vunpack.c.h.b16 %v2240
    %v2391 = vunpack.c.l.b16 %v2241
    %v2392 = vunpack.c.h.b16 %v2241
    %v2393 = vunpack.c.l.b16 %v2242
    %v2394 = vunpack.c.h.b16 %v2242
    %v2395 = vpack.c.b16 %v2379, %v2379
    %v2396 = vpack.c.b16 %v2380, %v2380
    %v2397 = vpack.c.b16 %v2381, %v2381
    %v2398 = vpack.c.b16 %v2382, %v2382
    %v2399 = vpack.c.b16 %v2383, %v2383
    %v2400 = vpack.c.b16 %v2384, %v2384
    %v2401 = vpack.c.b16 %v2385, %v2385
    %v2402 = vpack.c.b16 %v2386, %v2386
    %v2403 = vpack.c.b16 %v2387, %v2387
    %v2404 = vpack.c.b16 %v2388, %v2388
    %v2405 = vpack.c.b16 %v2389, %v2389
    %v2406 = vpack.c.b16 %v2390, %v2390
    %v2407 = vpack.c.b16 %v2391, %v2391
    %v2408 = vpack.c.b16 %v2392, %v2392
    %v2409 = vpack.c.b16 %v2393, %v2393
    %v2410 = vpack.c.b16 %v2394, %v2394
    %2427 = vmatpush.bf16.msra.mxu0 %v2250
    %2428 = vmatpush.bf16.msra.mxu0 %v2249
    %2429 = vmatpush.bf16.msra.mxu0 %v2248
    %2430 = vmatpush.bf16.msra.mxu0 %v2247
    %2431 = vmatpush.bf16.msra.mxu0 %v2246
    %2432 = vmatpush.bf16.msra.mxu0 %v2245
    %2433 = vmatpush.bf16.msra.mxu0 %v2244
    %2434 = vmatpush.bf16.msra.mxu0 %v2243
    %2435 = vmatmul.bf16.gmra.mxu0 %v2395
    %v2436 = vpop.f32.mrf.mxu0
    %v2437 = vadd.f32 0.0, %v2436
    %v2438 = vpop.f32.mrf.mxu0
    %2439 = vdwg.mxu0
    %2440 = vmatpush.bf16.msra.mxu0 %v2258
    %2441 = vmatpush.bf16.msra.mxu0 %v2257
    %2442 = vmatpush.bf16.msra.mxu0 %v2256
    %2443 = vmatpush.bf16.msra.mxu0 %v2255
    %2444 = vmatpush.bf16.msra.mxu0 %v2254
    %2445 = vmatpush.bf16.msra.mxu0 %v2253
    %2446 = vmatpush.bf16.msra.mxu0 %v2252
    %2447 = vmatpush.bf16.msra.mxu0 %v2251
    %2448 = vmatmul.bf16.gmra.mxu0 %v2396
    %v2449 = vpop.f32.mrf.mxu0
    %v2450 = vadd.f32 %v2437, %v2449
    %v2451 = vpop.f32.mrf.mxu0
    %2452 = vdwg.mxu0
    %2453 = vmatpush.bf16.msra.mxu0 %v2266
    %2454 = vmatpush.bf16.msra.mxu0 %v2265
    %2455 = vmatpush.bf16.msra.mxu0 %v2264
    %2456 = vmatpush.bf16.msra.mxu0 %v2263
    %2457 = vmatpush.bf16.msra.mxu0 %v2262
    %2458 = vmatpush.bf16.msra.mxu0 %v2261
    %2459 = vmatpush.bf16.msra.mxu0 %v2260
    %2460 = vmatpush.bf16.msra.mxu0 %v2259
    %2461 = vmatmul.bf16.gmra.mxu0 %v2397
    %v2462 = vpop.f32.mrf.mxu0
    %v2463 = vadd.f32 %v2450, %v2462
    %v2464 = vpop.f32.mrf.mxu0
    %2465 = vdwg.mxu0
    %2466 = vmatpush.bf16.msra.mxu0 %v2274
    %2467 = vmatpush.bf16.msra.mxu0 %v2273
    %2468 = vmatpush.bf16.msra.mxu0 %v2272
    %2469 = vmatpush.bf16.msra.mxu0 %v2271
    %2470 = vmatpush.bf16.msra.mxu0 %v2270
    %2471 = vmatpush.bf16.msra.mxu0 %v2269
    %2472 = vmatpush.bf16.msra.mxu0 %v2268
    %2473 = vmatpush.bf16.msra.mxu0 %v2267
    %2474 = vmatmul.bf16.gmra.mxu0 %v2398
    %v2475 = vpop.f32.mrf.mxu0
    %v2476 = vadd.f32 %v2463, %v2475
    %v2477 = vpop.f32.mrf.mxu0
    %2478 = vdwg.mxu0
    %2479 = vmatpush.bf16.msra.mxu0 %v2282
    %2480 = vmatpush.bf16.msra.mxu0 %v2281
    %2481 = vmatpush.bf16.msra.mxu0 %v2280
    %2482 = vmatpush.bf16.msra.mxu0 %v2279
    %2483 = vmatpush.bf16.msra.mxu0 %v2278
    %2484 = vmatpush.bf16.msra.mxu0 %v2277
    %2485 = vmatpush.bf16.msra.mxu0 %v2276
    %2486 = vmatpush.bf16.msra.mxu0 %v2275
    %2487 = vmatmul.bf16.gmra.mxu0 %v2399
    %v2488 = vpop.f32.mrf.mxu0
    %v2489 = vadd.f32 %v2476, %v2488
    %v2490 = vpop.f32.mrf.mxu0
    %2491 = vdwg.mxu0
    %2492 = vmatpush.bf16.msra.mxu0 %v2290
    %2493 = vmatpush.bf16.msra.mxu0 %v2289
    %2494 = vmatpush.bf16.msra.mxu0 %v2288
    %2495 = vmatpush.bf16.msra.mxu0 %v2287
    %2496 = vmatpush.bf16.msra.mxu0 %v2286
    %2497 = vmatpush.bf16.msra.mxu0 %v2285
    %2498 = vmatpush.bf16.msra.mxu0 %v2284
    %2499 = vmatpush.bf16.msra.mxu0 %v2283
    %2500 = vmatmul.bf16.gmra.mxu0 %v2400
    %v2501 = vpop.f32.mrf.mxu0
    %v2502 = vadd.f32 %v2489, %v2501
    %v2503 = vpop.f32.mrf.mxu0
    %2504 = vdwg.mxu0
    %2505 = vmatpush.bf16.msra.mxu0 %v2298
    %2506 = vmatpush.bf16.msra.mxu0 %v2297
    %2507 = vmatpush.bf16.msra.mxu0 %v2296
    %2508 = vmatpush.bf16.msra.mxu0 %v2295
    %2509 = vmatpush.bf16.msra.mxu0 %v2294
    %2510 = vmatpush.bf16.msra.mxu0 %v2293
    %2511 = vmatpush.bf16.msra.mxu0 %v2292
    %2512 = vmatpush.bf16.msra.mxu0 %v2291
    %2513 = vmatmul.bf16.gmra.mxu0 %v2401
    %v2514 = vpop.f32.mrf.mxu0
    %v2515 = vadd.f32 %v2502, %v2514
    %v2516 = vpop.f32.mrf.mxu0
    %2517 = vdwg.mxu0
    %2518 = vmatpush.bf16.msra.mxu0 %v2306
    %2519 = vmatpush.bf16.msra.mxu0 %v2305
    %2520 = vmatpush.bf16.msra.mxu0 %v2304
    %2521 = vmatpush.bf16.msra.mxu0 %v2303
    %2522 = vmatpush.bf16.msra.mxu0 %v2302
    %2523 = vmatpush.bf16.msra.mxu0 %v2301
    %2524 = vmatpush.bf16.msra.mxu0 %v2300
    %2525 = vmatpush.bf16.msra.mxu0 %v2299
    %2526 = vmatmul.bf16.gmra.mxu0 %v2402
    %v2527 = vpop.f32.mrf.mxu0
    %v2528 = vadd.f32 %v2515, %v2527
    %v2529 = vpop.f32.mrf.mxu0
    %2530 = vdwg.mxu0
    %2531 = vmatpush.bf16.msra.mxu0 %v2314
    %2532 = vmatpush.bf16.msra.mxu0 %v2313
    %2533 = vmatpush.bf16.msra.mxu0 %v2312
    %2534 = vmatpush.bf16.msra.mxu0 %v2311
    %2535 = vmatpush.bf16.msra.mxu0 %v2310
    %2536 = vmatpush.bf16.msra.mxu0 %v2309
    %2537 = vmatpush.bf16.msra.mxu0 %v2308
    %2538 = vmatpush.bf16.msra.mxu0 %v2307
    %2539 = vmatmul.bf16.gmra.mxu0 %v2403
    %v2540 = vpop.f32.mrf.mxu0
    %v2541 = vadd.f32 %v2528, %v2540
    %v2542 = vpop.f32.mrf.mxu0
    %2543 = vdwg.mxu0
    %2544 = vmatpush.bf16.msra.mxu0 %v2322
    %2545 = vmatpush.bf16.msra.mxu0 %v2321
    %2546 = vmatpush.bf16.msra.mxu0 %v2320
    %2547 = vmatpush.bf16.msra.mxu0 %v2319
    %2548 = vmatpush.bf16.msra.mxu0 %v2318
    %2549 = vmatpush.bf16.msra.mxu0 %v2317
    %2550 = vmatpush.bf16.msra.mxu0 %v2316
    %2551 = vmatpush.bf16.msra.mxu0 %v2315
    %2552 = vmatmul.bf16.gmra.mxu0 %v2404
    %v2553 = vpop.f32.mrf.mxu0
    %v2554 = vadd.f32 %v2541, %v2553
    %v2555 = vpop.f32.mrf.mxu0
    %2556 = vdwg.mxu0
    %2557 = vmatpush.bf16.msra.mxu0 %v2330
    %2558 = vmatpush.bf16.msra.mxu0 %v2329
    %2559 = vmatpush.bf16.msra.mxu0 %v2328
    %2560 = vmatpush.bf16.msra.mxu0 %v2327
    %2561 = vmatpush.bf16.msra.mxu0 %v2326
    %2562 = vmatpush.bf16.msra.mxu0 %v2325
    %2563 = vmatpush.bf16.msra.mxu0 %v2324
    %2564 = vmatpush.bf16.msra.mxu0 %v2323
    %2565 = vmatmul.bf16.gmra.mxu0 %v2405
    %v2566 = vpop.f32.mrf.mxu0
    %v2567 = vadd.f32 %v2554, %v2566
    %v2568 = vpop.f32.mrf.mxu0
    %2569 = vdwg.mxu0
    %2570 = vmatpush.bf16.msra.mxu0 %v2338
    %2571 = vmatpush.bf16.msra.mxu0 %v2337
    %2572 = vmatpush.bf16.msra.mxu0 %v2336
    %2573 = vmatpush.bf16.msra.mxu0 %v2335
    %2574 = vmatpush.bf16.msra.mxu0 %v2334
    %2575 = vmatpush.bf16.msra.mxu0 %v2333
    %2576 = vmatpush.bf16.msra.mxu0 %v2332
    %2577 = vmatpush.bf16.msra.mxu0 %v2331
    %2578 = vmatmul.bf16.gmra.mxu0 %v2406
    %v2579 = vpop.f32.mrf.mxu0
    %v2580 = vadd.f32 %v2567, %v2579
    %v2581 = vpop.f32.mrf.mxu0
    %2582 = vdwg.mxu0
    %2583 = vmatpush.bf16.msra.mxu0 %v2346
    %2584 = vmatpush.bf16.msra.mxu0 %v2345
    %2585 = vmatpush.bf16.msra.mxu0 %v2344
    %2586 = vmatpush.bf16.msra.mxu0 %v2343
    %2587 = vmatpush.bf16.msra.mxu0 %v2342
    %2588 = vmatpush.bf16.msra.mxu0 %v2341
    %2589 = vmatpush.bf16.msra.mxu0 %v2340
    %2590 = vmatpush.bf16.msra.mxu0 %v2339
    %2591 = vmatmul.bf16.gmra.mxu0 %v2407
    %v2592 = vpop.f32.mrf.mxu0
    %v2593 = vadd.f32 %v2580, %v2592
    %v2594 = vpop.f32.mrf.mxu0
    %2595 = vdwg.mxu0
    %2596 = vmatpush.bf16.msra.mxu0 %v2354
    %2597 = vmatpush.bf16.msra.mxu0 %v2353
    %2598 = vmatpush.bf16.msra.mxu0 %v2352
    %2599 = vmatpush.bf16.msra.mxu0 %v2351
    %2600 = vmatpush.bf16.msra.mxu0 %v2350
    %2601 = vmatpush.bf16.msra.mxu0 %v2349
    %2602 = vmatpush.bf16.msra.mxu0 %v2348
    %2603 = vmatpush.bf16.msra.mxu0 %v2347
    %2604 = vmatmul.bf16.gmra.mxu0 %v2408
    %v2605 = vpop.f32.mrf.mxu0
    %v2606 = vadd.f32 %v2593, %v2605
    %v2607 = vpop.f32.mrf.mxu0
    %2608 = vdwg.mxu0
    %2609 = vmatpush.bf16.msra.mxu0 %v2362
    %2610 = vmatpush.bf16.msra.mxu0 %v2361
    %2611 = vmatpush.bf16.msra.mxu0 %v2360
    %2612 = vmatpush.bf16.msra.mxu0 %v2359
    %2613 = vmatpush.bf16.msra.mxu0 %v2358
    %2614 = vmatpush.bf16.msra.mxu0 %v2357
    %2615 = vmatpush.bf16.msra.mxu0 %v2356
    %2616 = vmatpush.bf16.msra.mxu0 %v2355
    %2617 = vmatmul.bf16.gmra.mxu0 %v2409
    %v2618 = vpop.f32.mrf.mxu0
    %v2619 = vadd.f32 %v2606, %v2618
    %v2620 = vpop.f32.mrf.mxu0
    %2621 = vdwg.mxu0
    %2622 = vmatpush.bf16.msra.mxu0 %v2370
    %2623 = vmatpush.bf16.msra.mxu0 %v2369
    %2624 = vmatpush.bf16.msra.mxu0 %v2368
    %2625 = vmatpush.bf16.msra.mxu0 %v2367
    %2626 = vmatpush.bf16.msra.mxu0 %v2366
    %2627 = vmatpush.bf16.msra.mxu0 %v2365
    %2628 = vmatpush.bf16.msra.mxu0 %v2364
    %2629 = vmatpush.bf16.msra.mxu0 %v2363
    %2630 = vmatmul.bf16.gmra.mxu0 %v2410
    %v2631 = vpop.f32.mrf.mxu0
    %v2632 = vadd.f32 %v2619, %v2631
    %v2633 = vpop.f32.mrf.mxu0
    %2634 = vdwg.mxu0
    %v2635 = vpack.c.bf16 %v2632, %v2632
    %v2636 = vld [vmem:[%s3] sm:$0xf]
    %v2637 = vld [vmem:[%s3 + $0x4] sm:$0xf]
    %v2638 = vld [vmem:[%s3 + $0x8] sm:$0xf]
    %v2639 = vld [vmem:[%s3 + $0xc] sm:$0xf]
    %v2640 = vld [vmem:[%s3 + $0x10] sm:$0xf]
    %v2641 = vld [vmem:[%s3 + $0x14] sm:$0xf]
    %v2642 = vld [vmem:[%s3 + $0x18] sm:$0xf]
    %v2643 = vld [vmem:[%s3 + $0x1c] sm:$0xf]
    %v2644 = vld [vmem:[%s3 + $0x20] sm:$0xf]
    %v2645 = vld [vmem:[%s3 + $0x24] sm:$0xf]
    %v2646 = vld [vmem:[%s3 + $0x28] sm:$0xf]
    %v2647 = vld [vmem:[%s3 + $0x2c] sm:$0xf]
    %v2648 = vld [vmem:[%s3 + $0x30] sm:$0xf]
    %v2649 = vld [vmem:[%s3 + $0x34] sm:$0xf]
    %v2650 = vld [vmem:[%s3 + $0x38] sm:$0xf]
    %v2651 = vld [vmem:[%s3 + $0x3c] sm:$0xf]
    %v2668 = vunpack.c.l.b16 %v2636
    %v2669 = vunpack.c.l.b16 %v2637
    %v2670 = vunpack.c.l.b16 %v2638
    %v2671 = vunpack.c.l.b16 %v2639
    %v2672 = vunpack.c.l.b16 %v2640
    %v2673 = vunpack.c.l.b16 %v2641
    %v2674 = vunpack.c.l.b16 %v2642
    %v2675 = vunpack.c.l.b16 %v2643
    %v2676 = vunpack.c.l.b16 %v2644
    %v2677 = vunpack.c.l.b16 %v2645
    %v2678 = vunpack.c.l.b16 %v2646
    %v2679 = vunpack.c.l.b16 %v2647
    %v2680 = vunpack.c.l.b16 %v2648
    %v2681 = vunpack.c.l.b16 %v2649
    %v2682 = vunpack.c.l.b16 %v2650
    %v2683 = vunpack.c.l.b16 %v2651
    %v2684 = vpack.c.b16 %v2669, %v2668
    %v2685 = vpack.c.b16 %v2671, %v2670
    %v2686 = vpack.c.b16 %v2673, %v2672
    %v2687 = vpack.c.b16 %v2675, %v2674
    %v2688 = vpack.c.b16 %v2677, %v2676
    %v2689 = vpack.c.b16 %v2679, %v2678
    %v2690 = vpack.c.b16 %v2681, %v2680
    %v2691 = vpack.c.b16 %v2683, %v2682
    %2700 = vmatpush.bf16.msra.mxu0 %v2691
    %2701 = vmatpush.bf16.msra.mxu0 %v2690
    %2702 = vmatpush.bf16.msra.mxu0 %v2689
    %2703 = vmatpush.bf16.msra.mxu0 %v2688
    %2704 = vmatpush.bf16.msra.mxu0 %v2687
    %2705 = vmatpush.bf16.msra.mxu0 %v2686
    %2706 = vmatpush.bf16.msra.mxu0 %v2685
    %2707 = vmatpush.bf16.msra.mxu0 %v2684
    %2708 = vmatmul.bf16.gmra.mxu0 %v2635
    %v2709 = vpop.f32.mrf.mxu0
    %v2710 = vadd.f32 0.0, %v2709
    %v2711 = vpop.f32.mrf.mxu0
    %2712 = vdwg.mxu0
    %v2713 = vmax.f32 %v2710, 0.0
    %v2714 = vpack.c.bf16 %v2713, %v2713
    %v2715 = vld [vmem:[%s4] sm:$0xf]
    %v2716 = vld [vmem:[%s4 + $0x4] sm:$0xf]
    %v2717 = vld [vmem:[%s4 + $0x8] sm:$0xf]
    %v2718 = vld [vmem:[%s4 + $0xc] sm:$0xf]
    %v2719 = vld [vmem:[%s4 + $0x10] sm:$0xf]
    %v2720 = vld [vmem:[%s4 + $0x14] sm:$0xf]
    %v2721 = vld [vmem:[%s4 + $0x18] sm:$0xf]
    %v2722 = vld [vmem:[%s4 + $0x1c] sm:$0xf]
    %v2723 = vld [vmem:[%s4 + $0x20] sm:$0xf]
    %v2724 = vld [vmem:[%s4 + $0x24] sm:$0xf]
    %v2725 = vld [vmem:[%s4 + $0x28] sm:$0xf]
    %v2726 = vld [vmem:[%s4 + $0x2c] sm:$0xf]
    %v2727 = vld [vmem:[%s4 + $0x30] sm:$0xf]
    %v2728 = vld [vmem:[%s4 + $0x34] sm:$0xf]
    %v2729 = vld [vmem:[%s4 + $0x38] sm:$0xf]
    %v2730 = vld [vmem:[%s4 + $0x3c] sm:$0xf]
    %v2747 = vunpack.c.l.b16 %v2715
    %v2748 = vunpack.c.l.b16 %v2716
    %v2749 = vunpack.c.l.b16 %v2717
    %v2750 = vunpack.c.l.b16 %v2718
    %v2751 = vunpack.c.l.b16 %v2719
    %v2752 = vunpack.c.l.b16 %v2720
    %v2753 = vunpack.c.l.b16 %v2721
    %v2754 = vunpack.c.l.b16 %v2722
    %v2755 = vunpack.c.l.b16 %v2723
    %v2756 = vunpack.c.l.b16 %v2724
    %v2757 = vunpack.c.l.b16 %v2725
    %v2758 = vunpack.c.l.b16 %v2726
    %v2759 = vunpack.c.l.b16 %v2727
    %v2760 = vunpack.c.l.b16 %v2728
    %v2761 = vunpack.c.l.b16 %v2729
    %v2762 = vunpack.c.l.b16 %v2730
    %v2763 = vpack.c.b16 %v2748, %v2747
    %v2764 = vpack.c.b16 %v2750, %v2749
    %v2765 = vpack.c.b16 %v2752, %v2751
    %v2766 = vpack.c.b16 %v2754, %v2753
    %v2767 = vpack.c.b16 %v2756, %v2755
    %v2768 = vpack.c.b16 %v2758, %v2757
    %v2769 = vpack.c.b16 %v2760, %v2759
    %v2770 = vpack.c.b16 %v2762, %v2761
    %2779 = vmatpush.bf16.msra.mxu0 %v2770
    %2780 = vmatpush.bf16.msra.mxu0 %v2769
    %2781 = vmatpush.bf16.msra.mxu0 %v2768
    %2782 = vmatpush.bf16.msra.mxu0 %v2767
    %2783 = vmatpush.bf16.msra.mxu0 %v2766
    %2784 = vmatpush.bf16.msra.mxu0 %v2765
    %2785 = vmatpush.bf16.msra.mxu0 %v2764
    %2786 = vmatpush.bf16.msra.mxu0 %v2763
    %2787 = vmatmul.bf16.gmra.mxu0 %v2714
    %v2788 = vpop.f32.mrf.mxu0
    %v2789 = vadd.f32 0.0, %v2788
    %v2790 = vpop.f32.mrf.mxu0
    %2791 = vdwg.mxu0
    %2792 = vmax.xlane.f32.xlu0 %v2789
    %v2793 = vpop.xlane.xlu0 %2792
    %v2794 = vsub.f32 %v2789, %v2793
    %v2795 = vmul.f32 %v2794, 1.442695
    %v2796 = vpow.pop %v2795
    %2797 = vadd.xlane.f32.xlu0 %v2796
    %v2798 = vpop.xlane.xlu0 %2797
    %v2799 = vrcp.pop %v2798
    %v2800 = vmul.f32 %v2798, %v2799
    %v2801 = vsub.f32 1.0, %v2800
    %v2802 = vmul.f32 %v2799, %v2801
    %v2803 = vadd.f32 %v2799, %v2802
    %vm2804 = vweird.f32 %v2798
    %vm2805 = vweird.f32 %v2799
    %vm2806 = vmor %vm2804, %vm2805
    %v2807 = vsel %vm2806, %v2799, %v2803
    %v2808 = vand.u32 2147483647, %v2798
    %vm2809 = vcmp.eq.f32.partialorder %v2808, 8.507059e+37
    %v2810 = vand.u32 %v2798, 2147483648
    %v2811 = vor.u32 1.1754944e-38, %v2810
    %v2812 = vsel %vm2809, %v2811, %v2807
    %v2813 = vmul.f32 %v2796, %v2812
    %2814 = vst [vmem:[#allocation2] sm:$0xff] %v2813
    // Predicated region
    $region22: #{tpu_custom_call.1} parent=1 // pred_check
      _
    $region23: #{tpu_custom_call.1} parent=1 // pred_check_branch
      %2816 = sbr.rel (0) target = $region25
    $region24: #{tpu_custom_call.1} parent=1 // pred_region
      %2818 = vsyncadd [#allocation3], 0
      %s2820 = sshll.u32 [#allocation2], 4
      %s2821 = int_to_ptr.vmem [resolvable:$true] %s2820
      %s2822 = sshll.u32 %s5, 4
      %s2823 = int_to_ptr.hbm [resolvable:$true] %s2822
      %2825 = dma.vmem_to_hbm [thread:$0]  %s2821, 128, %s2823, [#allocation3]
    $region25: #{tpu_custom_call.1} parent=1 // pred_fallthru
      _
    // Predicated region
    $region26: #{tpu_custom_call.1} parent=1 // pred_check
      _
    $region27: #{tpu_custom_call.1} parent=1 // pred_check_branch
      %2827 = sbr.rel (0) target = $region29
    $region28: #{tpu_custom_call.1} parent=1 // pred_region
      %2829 = dma.done [#allocation3], 128
    $region29: #{tpu_custom_call.1} parent=1 // pred_fallthru
      _
    %2830 = vsyncpa [#allocation3], 1

</llo_original>
